<compile_context>
chip_gen: v5e
topology: v5e:2x2
jax: 0.10.0
libtpu: 0.0.40
codegen_flags: <defaults>
</compile_context>

<pallas_src>
import math

import jax
import jax.numpy as jnp
from jax.experimental import pallas as pl
from jax.experimental.pallas import tpu as pltpu


def _transpose_tile_kernel(x_ref, o_ref):
    # x_ref block: (gl, tm, tn)  ->  o_ref block: (gl, tn, tm)
    o_ref[...] = jnp.swapaxes(x_ref[...], 1, 2)


_TINY_BYPASS_BYTES = 1 << 20       # < 1 MiB total: let XLA handle it
_GROUP_TARGET_BYTES = 2 << 20      # ~2 MiB per buffer when grouping L slices
_DEEP_PIPELINE_BYTES = 512 << 10   # blocks <= 512 KiB get 3-deep buffering


def _max_tile(itemsize: int) -> int:
    """Dtype-aware tile cap: keeps per-buffer bytes <= ~4.5 MiB while keeping
    the per-row contiguous DMA segment (tile * itemsize) >= ~2-4 KiB."""
    if itemsize >= 8:
        return 512
    if itemsize == 4:
        return 1024
    if itemsize == 2:
        return 1536
    return 2048


def _pick_tile(dim: int, max_tile: int) -> int:
    """Pick a tile for one of the last two dims.

    dim <= max_tile: take the whole dim (full-extent block is always legal).
    dim >  max_tile: prefer the largest 128-multiple that divides dim exactly
    (lane-dense, no masked edges); otherwise use max_tile with cdiv edge tiles
    (only the edge blocks pay masked vst.msk)."""
    if dim <= max_tile:
        return dim
    for t in range(max_tile, 127, -128):
        if dim % t == 0:
            return t
    return max_tile


def _vmem_capacity_bytes() -> int:
    try:
        return int(pltpu.get_tpu_info().vmem_capacity_bytes)
    except Exception:
        return 64 << 20  # conservative fallback: v7x per-TensorCore VMEM


def _block_spec(shape, index_map, deep_pipeline: bool) -> pl.BlockSpec:
    if deep_pipeline:
        try:
            return pl.BlockSpec(shape, index_map, pipeline_mode=pl.Buffered(3))
        except TypeError:
            pass  # older jax without pipeline_mode kwarg: fall back to default
    return pl.BlockSpec(shape, index_map)


def transpose_last_two(x):
    """Pallas equivalent of torch.Tensor.transpose(-2, -1) for rank >= 2 input."""
    *lead, M, N = x.shape
    L = math.prod(lead) if lead else 1
    itemsize = jnp.dtype(x.dtype).itemsize
    total_bytes = int(x.size) * itemsize

    # Tiny tensors: pallas_call fixed overhead + masked partial stores dominate;
    # XLA's native transpose is already near roofline here.
    if total_bytes < _TINY_BYPASS_BYTES or x.size == 0:
        return jnp.swapaxes(x, -2, -1)

    x3 = x.reshape(L, M, N)

    max_tile = _max_tile(itemsize)
    tm = _pick_tile(M, max_tile)
    tn = _pick_tile(N, max_tile)

    if tm == M and tn == N:
        # (M, N) is a single block: group leading slices into the block so the
        # per-step DMA is large.  cdiv on L (masked edge block) keeps the
        # grouping effective even for prime/awkward batch sizes.
        slice_bytes = max(M * N * itemsize, 1)
        gl = min(L, max(1, _GROUP_TARGET_BYTES // slice_bytes))
    else:
        gl = 1

    grid = (pl.cdiv(L, gl), pl.cdiv(M, tm), pl.cdiv(N, tn))

    block_bytes = gl * tm * tn * itemsize
    deep_pipeline = block_bytes <= _DEEP_PIPELINE_BYTES

    # in + out, double/triple buffered, plus headroom; clamp to ~80% of the
    # physical per-core VMEM so the same code is safe on v5e/v6e/v7x.
    bufs = 6 if deep_pipeline else 4
    vmem_limit = int(
        min(max(32 << 20, (bufs + 2) * block_bytes),
            int(0.8 * _vmem_capacity_bytes()))
    )

    grid_spec = pltpu.PrefetchScalarGridSpec(
        num_scalar_prefetch=0,
        grid=grid,
        in_specs=[_block_spec((gl, tm, tn), lambda l, i, j: (l, i, j),
                              deep_pipeline)],
        out_specs=_block_spec((gl, tn, tm), lambda l, i, j: (l, j, i),
                              deep_pipeline),
    )

    cost = pl.CostEstimate(flops=0, transcendentals=0,
                           bytes_accessed=2 * total_bytes)

    y3 = pl.pallas_call(
        _transpose_tile_kernel,
        out_shape=jax.ShapeDtypeStruct((L, N, M), x.dtype),
        grid_spec=grid_spec,
        compiler_params=pltpu.CompilerParams(
            dimension_semantics=("parallel", "parallel", "parallel"),
            vmem_limit_bytes=vmem_limit,
        ),
        cost_estimate=cost,
    )(x3)

    return y3.reshape(*lead, N, M)


if __name__ == "__main__":
    key = jax.random.PRNGKey(0)
    k1, k2, k3, k4 = jax.random.split(key, 4)

    # 1) Small shape consistent with the module's forward: < 1 MiB, uses the
    #    jnp.swapaxes bypass (Pallas overhead would dominate at this size).
    x_tiny = jax.random.normal(k1, (2, 4, 16, 32), dtype=jnp.float32)
    y_tiny = jax.block_until_ready(transpose_last_two(x_tiny))
    assert y_tiny.shape == (2, 4, 32, 16), y_tiny.shape
    assert jnp.array_equal(y_tiny, jnp.swapaxes(x_tiny, -2, -1)), "tiny mismatch"

    # 2) Grouped-L Pallas path: whole (M, N) per block, cdiv on L with a
    #    masked edge block (L=8, gl=6 -> 2 grid steps).
    x_grp = jax.random.normal(k2, (2, 4, 256, 320), dtype=jnp.float32)
    y_grp = jax.block_until_ready(transpose_last_two(x_grp))
    assert y_grp.shape == (2, 4, 320, 256), y_grp.shape
    assert jnp.array_equal(y_grp, jnp.swapaxes(x_grp, -2, -1)), "grouped mismatch"

    # 3) cdiv edge-tiled Pallas path: M, N not multiples of 128 -> 1024-tiles
    #    with masked edge blocks (no full-extent VMEM blow-up).
    x_edge = jax.random.normal(k3, (1, 1160, 1288), dtype=jnp.float32)
    y_edge = jax.block_until_ready(transpose_last_two(x_edge))
    assert y_edge.shape == (1, 1288, 1160), y_edge.shape
    assert jnp.array_equal(y_edge, jnp.swapaxes(x_edge, -2, -1)), "edge mismatch"

    # 4) Skinny shape: small (64 KiB) blocks -> deeper pipelining path.
    x_thin = jax.random.normal(k4, (1, 16, 40960), dtype=jnp.float32)
    y_thin = jax.block_until_ready(transpose_last_two(x_thin))
    assert y_thin.shape == (1, 40960, 16), y_thin.shape
    assert jnp.array_equal(y_thin, jnp.swapaxes(x_thin, -2, -1)), "thin mismatch"

    print("KERNEL_OK")
</pallas_src>

<mosaic_0001>
module attributes {stable_mosaic.version = 11 : i64} {
  func.func @_transpose_tile_kernel(%arg0: i32, %arg1: i32, %arg2: i32, %arg3: memref<6x256x320xf32, #tpu.memory_space<vmem>>, %arg4: memref<6x320x256xf32, #tpu.memory_space<vmem>>) attributes {dimension_semantics = [#tpu.dimension_semantics<parallel>, #tpu.dimension_semantics<parallel>, #tpu.dimension_semantics<parallel>], iteration_bounds = array<i64: 2, 1, 1>, scalar_prefetch = 0 : i64, scratch_operands = 0 : i64, tpu.core_type = #tpu.core_type<tc>, window_params = [{transform_indices = @transform_0, window_bounds = array<i64: 6, 256, 320>}, {transform_indices = @transform_1, window_bounds = array<i64: 6, 320, 256>}]} {
    %c0 = arith.constant 0 : index
    %c0_0 = arith.constant 0 : index
    %c0_1 = arith.constant 0 : index
    %0 = vector.load %arg3[%c0, %c0_0, %c0_1] : memref<6x256x320xf32, #tpu.memory_space<vmem>>, vector<6x256x320xf32>
    %1 = tpu.transpose %0, [0, 2, 1] : vector<6x256x320xf32> -> vector<6x320x256xf32>
    %c0_2 = arith.constant 0 : index
    %c0_3 = arith.constant 0 : index
    %c0_4 = arith.constant 0 : index
    %2 = vector.load %arg4[%c0_2, %c0_3, %c0_4] : memref<6x320x256xf32, #tpu.memory_space<vmem>>, vector<6x320x256xf32>
    tpu.vector_store %arg4[%c0_2, %c0_3, %c0_4], %1 {strides = array<i32>} : memref<6x320x256xf32, #tpu.memory_space<vmem>>, vector<6x320x256xf32>,
    return
  }
  func.func @transform_0(%arg0: i32, %arg1: i32, %arg2: i32) -> (i32, i32, i32) {
    %c0_i32 = arith.constant 0 : i32
    return %arg0, %arg1, %arg2 : i32, i32, i32
  }
  func.func @transform_1(%arg0: i32, %arg1: i32, %arg2: i32) -> (i32, i32, i32) {
    %c0_i32 = arith.constant 0 : i32
    return %arg0, %arg2, %arg1 : i32, i32, i32
  }
}

</mosaic_0001>

<llo_original>
// kernel: tpu_custom_call.1
$region0: #{tpu_custom_call.1}
  #allocation0 [shape = 'u32[]', space=smem, size = 0x4, offset = 0x4, fixed_abs, tag = 'smem constant byte address 0x4 - core index']
  #allocation1 [shape = 'u32[72,128]{1,0:T(1,128)}', space=vmem, size = 0x9000, scoped, tag = 'internal scratch']
  %s0 = inlined_call_operand.vmem [shape: f32[8,256,320], index: 0, kind: input, shape index: {}]
  %s1 = inlined_call_operand.hbm [shape: f32[8,320,256], index: 1, kind: output, shape index: {}]
  %s2 = sld [smem:[#allocation0]]
  $region37: #{tpu_custom_call.1} parent=0
    _
  %s4 = ssub.s32 1, %s2
  %s5 = scalar_select 0, %s4, %s2
  $region1: #{tpu_custom_call.1} parent=0
    #allocation2 [shape = 'u8[3932160]{0}', space=vmem, size = 0x3c0000, scoped, tag = 'output window, operand 0']
    #allocation3 [shape = 's32[2]{0}', space=sflag, size = 0x8, scoped, tag = 'scoped memory for tpu_custom_call.1']
    %6 = vsyncpa [#allocation3], 0
    %s7 = scalar_lea.sflag [#allocation3], 1
    %8 = vsyncpa %s7, 0
    loop: start=0, step=1, limit=4
    $region2: #{tpu_custom_call.1} parent=1 // loop_pre_header
      _
    $region3: #{tpu_custom_call.1} parent=1 // loop_header
      %s10 = sphi 0, %s14
      %p11 = scmp.ge.s32.totalorder %s10, 4
      %s17 = sphi 0, %s36
      %s18 = sphi 0, %s32
      %s19 = sphi 0, %s28
      %s20 = sphi 0, %s17
      %s21 = sphi 0, %s18
      %s22 = sphi 0, %s19
      %s23 = sphi 0, %s20
      %s24 = sphi 0, %s21
      %s25 = sphi 0, %s22
      %s43 = sphi 0, %s45
      %s46 = sphi 0, %s43
      %s47 = sphi 0, %s46
      %s63 = sphi 0, %s47
      %s73 = sphi 0, %s75
      %s76 = sphi 0, %s73
      %s77 = sphi 0, %s76
      %s93 = sphi 0, %s77
    $region4: #{tpu_custom_call.1} parent=1 // loop_header_branch
      %13 = sbr.rel (%p11) target = $region8
    $region5: #{tpu_custom_call.1} parent=1 // loop_body
      %s15 = ssub.s32 %s10, 1
      %s16 = ssub.s32 %s10, 2
      %s26 = sadd.s32 1, %s19
      %p27 = scmp.ge.s32.totalorder %s26, 1
      %s28 = scalar_select %p27, 0, %s26
      %s29 = sadd.s32 1, %s18
      %s30 = scalar_select %p27, %s29, %s18
      %p31 = scmp.ge.s32.totalorder %s30, 1
      %s32 = scalar_select %p31, 0, %s30
      %s33 = sadd.s32 1, %s17
      %s34 = scalar_select %p31, %s33, %s17
      %p35 = scmp.ge.s32.totalorder %s34, 2
      %s36 = scalar_select %p35, 0, %s34
      %s37 = ssub.s32 %s17, %s36
      %s38 = ssub.s32 %s18, %s32
      %s39 = sor.u32 %s37, %s38
      %s40 = ssub.s32 %s19, %s28
      %s41 = sor.u32 %s39, %s40
      %p42 = scmp.eq.s32.totalorder %s41, 0
      %s44 = sadd.s32 %s43, 1
      %s45 = scalar_select %p42, %s43, %s44
      %p48 = pneg %p42
      %p49 = scmp.eq.s32.totalorder %s10, 1
      %p50 = por %p48, %p49
      %p51 = scmp.ne.s32.totalorder %s43, %s46
      %p52 = scmp.eq.s32.totalorder %s10, 0
      %p53 = por %p51, %p52
      %p54 = scmp.ne.s32.totalorder %s43, %s46
      %p55 = scmp.eq.s32.totalorder %s15, 1
      %p56 = por %p54, %p55
      %p57 = scmp.ne.s32.totalorder %s46, %s47
      %p58 = scmp.eq.s32.totalorder %s15, 0
      %p59 = por %p57, %p58
      %p60 = scmp.ne.s32.totalorder %s46, %s47
      %p61 = scmp.eq.s32.totalorder %s16, 1
      %p62 = por %p60, %p61
      %p64 = scmp.ne.s32.totalorder %s47, %s63
      %p65 = scmp.eq.s32.totalorder %s16, 0
      %p66 = por %p64, %p65
      %s67 = ssub.s32 %s17, %s36
      %s68 = ssub.s32 %s19, %s28
      %s69 = sor.u32 %s67, %s68
      %s70 = ssub.s32 %s18, %s32
      %s71 = sor.u32 %s69, %s70
      %p72 = scmp.eq.s32.totalorder %s71, 0
      %s74 = sadd.s32 %s73, 1
      %s75 = scalar_select %p72, %s73, %s74
      %p78 = pneg %p72
      %p79 = scmp.eq.s32.totalorder %s10, 1
      %p80 = por %p78, %p79
      %p81 = scmp.ne.s32.totalorder %s73, %s76
      %p82 = scmp.eq.s32.totalorder %s10, 0
      %p83 = por %p81, %p82
      %p84 = scmp.ne.s32.totalorder %s73, %s76
      %p85 = scmp.eq.s32.totalorder %s15, 1
      %p86 = por %p84, %p85
      %p87 = scmp.ne.s32.totalorder %s76, %s77
      %p88 = scmp.eq.s32.totalorder %s15, 0
      %p89 = por %p87, %p88
      %p90 = scmp.ne.s32.totalorder %s76, %s77
      %p91 = scmp.eq.s32.totalorder %s16, 1
      %p92 = por %p90, %p91
      %p94 = scmp.ne.s32.totalorder %s77, %s93
      %p95 = scmp.eq.s32.totalorder %s16, 0
      %p96 = por %p94, %p95
      %p97 = scmp.le.s32.totalorder 1, %s10
      %p98 = scmp.lt.s32.totalorder %s10, 3
      %p99 = pnand %p97, %p98
      %p100 = pneg %p99
      // Predicated region
      $region9: #{tpu_custom_call.1} parent=5 // pred_check
        _
      $region10: #{tpu_custom_call.1} parent=5 // pred_check_branch
        %102 = sbr.rel (%p99) target = $region12
      $region11: #{tpu_custom_call.1} parent=5 // pred_region
        %s103 = ssub.s32 %s10, 1
      $region12: #{tpu_custom_call.1} parent=5 // pred_fallthru
        _
      %p104 = scmp.lt.s32.totalorder %s10, 2
      // Predicated region
      $region13: #{tpu_custom_call.1} parent=5 // pred_check
        %p105 = pneg %p104
      $region14: #{tpu_custom_call.1} parent=5 // pred_check_branch
        %107 = sbr.rel (%p105) target = $region16
      $region15: #{tpu_custom_call.1} parent=5 // pred_region
        // Predicated region
        $region17: #{tpu_custom_call.1} parent=15 // pred_check
          %p108 = pneg %p53
        $region18: #{tpu_custom_call.1} parent=15 // pred_check_branch
          %110 = sbr.rel (%p108) target = $region20
        $region19: #{tpu_custom_call.1} parent=15 // pred_region
          %s111 = smul.u32 6, %s17
          %s112 = smul.u32 32, %s18
          %s113 = smul.u32 3, %s19
          %s114 = ssub.s32 8, %s111
          %p115 = scmp.lt.s32.totalorder %s114, 6
          %s116 = scalar_select %p115, %s114, 6
          %s117 = smul.u32 8, %s116
          %s118 = smul.u32 %s117, 32
          %s119 = smul.u32 %s118, 3
          %p120 = scmp.lt.s32.totalorder %s111, 7
          %s121 = scalar_select %p120, %s111, 7
          %p122 = scmp.lt.s32.totalorder %s112, 31
          %s123 = scalar_select %p122, %s112, 31
          %p124 = scmp.lt.s32.totalorder %s113, 2
          %s125 = scalar_select %p124, %s113, 2
          %s126 = smul.addr %s123, 3
          %s127 = sadd.s32 %s125, %s126
          %s128 = smul.addr %s121, 96
          %s129 = sadd.s32 %s127, %s128
          %s130 = smul.addr %s129, 8
          %s131 = scalar_lea.vmem %s0, %s130
          %s132 = smul.u32 6, %s17
          %s133 = smul.u32 32, %s18
          %s134 = smul.u32 3, %s19
          %s135 = ssub.s32 8, %s132
          %p136 = scmp.lt.s32.totalorder %s135, 6
          %s137 = scalar_select %p136, %s135, 6
          %s138 = smul.u32 8, %s137
          %s139 = smul.u32 %s138, 32
          %s140 = smul.u32 %s139, 3
        $region20: #{tpu_custom_call.1} parent=15 // pred_fallthru
          _
      $region16: #{tpu_custom_call.1} parent=5 // pred_fallthru
        _
      %p141 = scmp.le.s32.totalorder 1, %s10
      %p142 = scmp.lt.s32.totalorder %s10, 3
      %p143 = pnand %p141, %p142
      %p144 = pneg %p143
      // Predicated region
      $region21: #{tpu_custom_call.1} parent=5 // pred_check
        _
      $region22: #{tpu_custom_call.1} parent=5 // pred_check_branch
        %146 = sbr.rel (%p143) target = $region24
      $region23: #{tpu_custom_call.1} parent=5 // pred_region
        %s147 = ssub.s32 %s10, 1
        %s148 = smul.u32 6, %s20
        %s149 = smul.u32 32, %s21
        %s150 = smul.u32 3, %s22
        %s151 = ssub.s32 8, %s148
        %p152 = scmp.lt.s32.totalorder %s151, 6
        %s153 = scalar_select %p152, %s151, 6
        %s154 = smul.u32 8, %s153
        %s155 = smul.u32 %s154, 32
        %s156 = smul.u32 %s155, 3
        %p157 = scmp.lt.s32.totalorder %s148, 7
        %s158 = scalar_select %p157, %s148, 7
        %p159 = scmp.lt.s32.totalorder %s149, 31
        %s160 = scalar_select %p159, %s149, 31
        %p161 = scmp.lt.s32.totalorder %s150, 2
        %s162 = scalar_select %p161, %s150, 2
        %s163 = smul.addr %s160, 3
        %s164 = sadd.s32 %s162, %s163
        %s165 = smul.addr %s158, 96
        %s166 = sadd.s32 %s164, %s165
        %s167 = smul.addr %s166, 8
        %s168 = scalar_lea.vmem %s0, %s167
        %p169 = pneg %p59
        %p170 = pneg %p56
        %p171 = pneg %p89
        %p172 = pneg %p86
        %s173 = sand.u32 %s76, 1
        %s174 = scalar_lea.sflag [#allocation3], %s173
        %s175 = sand.u32 %s76, 1
        %s176 = smul.addr %s175, 3840
        %s177 = scalar_lea.vmem [#allocation2], %s176
        %s178 = smul.u32 6, %s20
        %s179 = smul.u32 32, %s21
        %s180 = smul.u32 3, %s22
        %s181 = ssub.s32 8, %s178
        %p182 = scmp.lt.s32.totalorder %s181, 6
        %s183 = scalar_select %p182, %s181, 6
        %s184 = smul.u32 8, %s183
        %s185 = smul.u32 %s184, 32
        %s186 = smul.u32 %s185, 3
        %p187 = scmp.lt.s32.totalorder %s178, 7
        %s188 = scalar_select %p187, %s178, 7
        %p189 = scmp.lt.s32.totalorder %s179, 31
        %s190 = scalar_select %p189, %s179, 31
        %p191 = scmp.lt.s32.totalorder %s180, 2
        %s192 = scalar_select %p191, %s180, 2
        %s193 = smul.addr %s190, 3
        %s194 = sadd.s32 %s192, %s193
        %s195 = smul.addr %s188, 96
        %s196 = sadd.s32 %s194, %s195
        %s197 = smul.addr %s196, 8
        %s198 = scalar_lea.vmem %s0, %s197
        %s199 = smul.u32 6, %s20
        %s200 = smul.u32 32, %s21
        %s201 = smul.u32 3, %s22
        %s202 = ssub.s32 8, %s199
        %p203 = scmp.lt.s32.totalorder %s202, 6
        %s204 = scalar_select %p203, %s202, 6
        %s205 = smul.u32 8, %s204
        %s206 = smul.u32 %s205, 32
        %s207 = smul.u32 %s206, 3
        %s208 = smul.u32 6, %s20
        %s209 = smul.u32 40, %s22
        %s210 = smul.u32 2, %s21
        %s211 = ssub.s32 8, %s208
        %p212 = scmp.lt.s32.totalorder %s211, 6
        %s213 = scalar_select %p212, %s211, 6
        %s214 = smul.u32 8, %s213
        %s215 = smul.u32 %s214, 40
        %s216 = smul.u32 %s215, 2
        %v217 = vld [vmem:[%s198] sm:$0xff]
        %v218 = vld [vmem:[%s198 + $0x8] sm:$0xff]
        %v219 = vld [vmem:[%s198 + $0x10] sm:$0xff]
        %v220 = vld [vmem:[%s198 + $0x18] sm:$0xff]
        %v221 = vld [vmem:[%s198 + $0x20] sm:$0xff]
        %v222 = vld [vmem:[%s198 + $0x28] sm:$0xff]
        %v223 = vld [vmem:[%s198 + $0x30] sm:$0xff]
        %v224 = vld [vmem:[%s198 + $0x38] sm:$0xff]
        %v225 = vld [vmem:[%s198 + $0x40] sm:$0xff]
        %v226 = vld [vmem:[%s198 + $0x48] sm:$0xff]
        %v227 = vld [vmem:[%s198 + $0x50] sm:$0xff]
        %v228 = vld [vmem:[%s198 + $0x58] sm:$0xff]
        %v229 = vld [vmem:[%s198 + $0x60] sm:$0xff]
        %v230 = vld [vmem:[%s198 + $0x68] sm:$0xff]
        %v231 = vld [vmem:[%s198 + $0x70] sm:$0xff]
        %v232 = vld [vmem:[%s198 + $0x78] sm:$0xff]
        %v233 = vld [vmem:[%s198 + $0x80] sm:$0xff]
        %v234 = vld [vmem:[%s198 + $0x88] sm:$0xff]
        %v235 = vld [vmem:[%s198 + $0x90] sm:$0xff]
        %v236 = vld [vmem:[%s198 + $0x98] sm:$0xff]
        %v237 = vld [vmem:[%s198 + $0xa0] sm:$0xff]
        %v238 = vld [vmem:[%s198 + $0xa8] sm:$0xff]
        %v239 = vld [vmem:[%s198 + $0xb0] sm:$0xff]
        %v240 = vld [vmem:[%s198 + $0xb8] sm:$0xff]
        %v241 = vld [vmem:[%s198 + $0xc0] sm:$0xff]
        %v242 = vld [vmem:[%s198 + $0xc8] sm:$0xff]
        %v243 = vld [vmem:[%s198 + $0xd0] sm:$0xff]
        %v244 = vld [vmem:[%s198 + $0xd8] sm:$0xff]
        %v245 = vld [vmem:[%s198 + $0xe0] sm:$0xff]
        %v246 = vld [vmem:[%s198 + $0xe8] sm:$0xff]
        %v247 = vld [vmem:[%s198 + $0xf0] sm:$0xff]
        %v248 = vld [vmem:[%s198 + $0xf8] sm:$0xff]
        %v249 = vld [vmem:[%s198 + $0x100] sm:$0xff]
        %v250 = vld [vmem:[%s198 + $0x108] sm:$0xff]
        %v251 = vld [vmem:[%s198 + $0x110] sm:$0xff]
        %v252 = vld [vmem:[%s198 + $0x118] sm:$0xff]
        %v253 = vld [vmem:[%s198 + $0x120] sm:$0xff]
        %v254 = vld [vmem:[%s198 + $0x128] sm:$0xff]
        %v255 = vld [vmem:[%s198 + $0x130] sm:$0xff]
        %v256 = vld [vmem:[%s198 + $0x138] sm:$0xff]
        %v257 = vld [vmem:[%s198 + $0x140] sm:$0xff]
        %v258 = vld [vmem:[%s198 + $0x148] sm:$0xff]
        %v259 = vld [vmem:[%s198 + $0x150] sm:$0xff]
        %v260 = vld [vmem:[%s198 + $0x158] sm:$0xff]
        %v261 = vld [vmem:[%s198 + $0x160] sm:$0xff]
        %v262 = vld [vmem:[%s198 + $0x168] sm:$0xff]
        %v263 = vld [vmem:[%s198 + $0x170] sm:$0xff]
        %v264 = vld [vmem:[%s198 + $0x178] sm:$0xff]
        %v265 = vld [vmem:[%s198 + $0x180] sm:$0xff]
        %v266 = vld [vmem:[%s198 + $0x188] sm:$0xff]
        %v267 = vld [vmem:[%s198 + $0x190] sm:$0xff]
        %v268 = vld [vmem:[%s198 + $0x198] sm:$0xff]
        %v269 = vld [vmem:[%s198 + $0x1a0] sm:$0xff]
        %v270 = vld [vmem:[%s198 + $0x1a8] sm:$0xff]
        %v271 = vld [vmem:[%s198 + $0x1b0] sm:$0xff]
        %v272 = vld [vmem:[%s198 + $0x1b8] sm:$0xff]
        %v273 = vld [vmem:[%s198 + $0x1c0] sm:$0xff]
        %v274 = vld [vmem:[%s198 + $0x1c8] sm:$0xff]
        %v275 = vld [vmem:[%s198 + $0x1d0] sm:$0xff]
        %v276 = vld [vmem:[%s198 + $0x1d8] sm:$0xff]
        %v277 = vld [vmem:[%s198 + $0x1e0] sm:$0xff]
        %v278 = vld [vmem:[%s198 + $0x1e8] sm:$0xff]
        %v279 = vld [vmem:[%s198 + $0x1f0] sm:$0xff]
        %v280 = vld [vmem:[%s198 + $0x1f8] sm:$0xff]
        %v281 = vld [vmem:[%s198 + $0x200] sm:$0xff]
        %v282 = vld [vmem:[%s198 + $0x208] sm:$0xff]
        %v283 = vld [vmem:[%s198 + $0x210] sm:$0xff]
        %v284 = vld [vmem:[%s198 + $0x218] sm:$0xff]
        %v285 = vld [vmem:[%s198 + $0x220] sm:$0xff]
        %v286 = vld [vmem:[%s198 + $0x228] sm:$0xff]
        %v287 = vld [vmem:[%s198 + $0x230] sm:$0xff]
        %v288 = vld [vmem:[%s198 + $0x238] sm:$0xff]
        %v289 = vld [vmem:[%s198 + $0x240] sm:$0xff]
        %v290 = vld [vmem:[%s198 + $0x248] sm:$0xff]
        %v291 = vld [vmem:[%s198 + $0x250] sm:$0xff]
        %v292 = vld [vmem:[%s198 + $0x258] sm:$0xff]
        %v293 = vld [vmem:[%s198 + $0x260] sm:$0xff]
        %v294 = vld [vmem:[%s198 + $0x268] sm:$0xff]
        %v295 = vld [vmem:[%s198 + $0x270] sm:$0xff]
        %v296 = vld [vmem:[%s198 + $0x278] sm:$0xff]
        %v297 = vld [vmem:[%s198 + $0x280] sm:$0xff]
        %v298 = vld [vmem:[%s198 + $0x288] sm:$0xff]
        %v299 = vld [vmem:[%s198 + $0x290] sm:$0xff]
        %v300 = vld [vmem:[%s198 + $0x298] sm:$0xff]
        %v301 = vld [vmem:[%s198 + $0x2a0] sm:$0xff]
        %v302 = vld [vmem:[%s198 + $0x2a8] sm:$0xff]
        %v303 = vld [vmem:[%s198 + $0x2b0] sm:$0xff]
        %v304 = vld [vmem:[%s198 + $0x2b8] sm:$0xff]
        %v305 = vld [vmem:[%s198 + $0x2c0] sm:$0xff]
        %v306 = vld [vmem:[%s198 + $0x2c8] sm:$0xff]
        %v307 = vld [vmem:[%s198 + $0x2d0] sm:$0xff]
        %v308 = vld [vmem:[%s198 + $0x2d8] sm:$0xff]
        %v309 = vld [vmem:[%s198 + $0x2e0] sm:$0xff]
        %v310 = vld [vmem:[%s198 + $0x2e8] sm:$0xff]
        %v311 = vld [vmem:[%s198 + $0x2f0] sm:$0xff]
        %v312 = vld [vmem:[%s198 + $0x2f8] sm:$0xff]
        %v313 = vld [vmem:[%s198 + $0x300] sm:$0xff]
        %v314 = vld [vmem:[%s198 + $0x308] sm:$0xff]
        %v315 = vld [vmem:[%s198 + $0x310] sm:$0xff]
        %v316 = vld [vmem:[%s198 + $0x318] sm:$0xff]
        %v317 = vld [vmem:[%s198 + $0x320] sm:$0xff]
        %v318 = vld [vmem:[%s198 + $0x328] sm:$0xff]
        %v319 = vld [vmem:[%s198 + $0x330] sm:$0xff]
        %v320 = vld [vmem:[%s198 + $0x338] sm:$0xff]
        %v321 = vld [vmem:[%s198 + $0x340] sm:$0xff]
        %v322 = vld [vmem:[%s198 + $0x348] sm:$0xff]
        %v323 = vld [vmem:[%s198 + $0x350] sm:$0xff]
        %v324 = vld [vmem:[%s198 + $0x358] sm:$0xff]
        %v325 = vld [vmem:[%s198 + $0x360] sm:$0xff]
        %v326 = vld [vmem:[%s198 + $0x368] sm:$0xff]
        %v327 = vld [vmem:[%s198 + $0x370] sm:$0xff]
        %v328 = vld [vmem:[%s198 + $0x378] sm:$0xff]
        %v329 = vld [vmem:[%s198 + $0x380] sm:$0xff]
        %v330 = vld [vmem:[%s198 + $0x388] sm:$0xff]
        %v331 = vld [vmem:[%s198 + $0x390] sm:$0xff]
        %v332 = vld [vmem:[%s198 + $0x398] sm:$0xff]
        %v333 = vld [vmem:[%s198 + $0x3a0] sm:$0xff]
        %v334 = vld [vmem:[%s198 + $0x3a8] sm:$0xff]
        %v335 = vld [vmem:[%s198 + $0x3b0] sm:$0xff]
        %v336 = vld [vmem:[%s198 + $0x3b8] sm:$0xff]
        %v337 = vld [vmem:[%s198 + $0x3c0] sm:$0xff]
        %v338 = vld [vmem:[%s198 + $0x3c8] sm:$0xff]
        %v339 = vld [vmem:[%s198 + $0x3d0] sm:$0xff]
        %v340 = vld [vmem:[%s198 + $0x3d8] sm:$0xff]
        %v341 = vld [vmem:[%s198 + $0x3e0] sm:$0xff]
        %v342 = vld [vmem:[%s198 + $0x3e8] sm:$0xff]
        %v343 = vld [vmem:[%s198 + $0x3f0] sm:$0xff]
        %v344 = vld [vmem:[%s198 + $0x3f8] sm:$0xff]
        %v345 = vld [vmem:[%s198 + $0x400] sm:$0xff]
        %v346 = vld [vmem:[%s198 + $0x408] sm:$0xff]
        %v347 = vld [vmem:[%s198 + $0x410] sm:$0xff]
        %v348 = vld [vmem:[%s198 + $0x418] sm:$0xff]
        %v349 = vld [vmem:[%s198 + $0x420] sm:$0xff]
        %v350 = vld [vmem:[%s198 + $0x428] sm:$0xff]
        %v351 = vld [vmem:[%s198 + $0x430] sm:$0xff]
        %v352 = vld [vmem:[%s198 + $0x438] sm:$0xff]
        %v353 = vld [vmem:[%s198 + $0x440] sm:$0xff]
        %v354 = vld [vmem:[%s198 + $0x448] sm:$0xff]
        %v355 = vld [vmem:[%s198 + $0x450] sm:$0xff]
        %v356 = vld [vmem:[%s198 + $0x458] sm:$0xff]
        %v357 = vld [vmem:[%s198 + $0x460] sm:$0xff]
        %v358 = vld [vmem:[%s198 + $0x468] sm:$0xff]
        %v359 = vld [vmem:[%s198 + $0x470] sm:$0xff]
        %v360 = vld [vmem:[%s198 + $0x478] sm:$0xff]
        %v361 = vld [vmem:[%s198 + $0x480] sm:$0xff]
        %v362 = vld [vmem:[%s198 + $0x488] sm:$0xff]
        %v363 = vld [vmem:[%s198 + $0x490] sm:$0xff]
        %v364 = vld [vmem:[%s198 + $0x498] sm:$0xff]
        %v365 = vld [vmem:[%s198 + $0x4a0] sm:$0xff]
        %v366 = vld [vmem:[%s198 + $0x4a8] sm:$0xff]
        %v367 = vld [vmem:[%s198 + $0x4b0] sm:$0xff]
        %v368 = vld [vmem:[%s198 + $0x4b8] sm:$0xff]
        %v369 = vld [vmem:[%s198 + $0x4c0] sm:$0xff]
        %v370 = vld [vmem:[%s198 + $0x4c8] sm:$0xff]
        %v371 = vld [vmem:[%s198 + $0x4d0] sm:$0xff]
        %v372 = vld [vmem:[%s198 + $0x4d8] sm:$0xff]
        %v373 = vld [vmem:[%s198 + $0x4e0] sm:$0xff]
        %v374 = vld [vmem:[%s198 + $0x4e8] sm:$0xff]
        %v375 = vld [vmem:[%s198 + $0x4f0] sm:$0xff]
        %v376 = vld [vmem:[%s198 + $0x4f8] sm:$0xff]
        %v377 = vld [vmem:[%s198 + $0x500] sm:$0xff]
        %v378 = vld [vmem:[%s198 + $0x508] sm:$0xff]
        %v379 = vld [vmem:[%s198 + $0x510] sm:$0xff]
        %v380 = vld [vmem:[%s198 + $0x518] sm:$0xff]
        %v381 = vld [vmem:[%s198 + $0x520] sm:$0xff]
        %v382 = vld [vmem:[%s198 + $0x528] sm:$0xff]
        %v383 = vld [vmem:[%s198 + $0x530] sm:$0xff]
        %v384 = vld [vmem:[%s198 + $0x538] sm:$0xff]
        %v385 = vld [vmem:[%s198 + $0x540] sm:$0xff]
        %v386 = vld [vmem:[%s198 + $0x548] sm:$0xff]
        %v387 = vld [vmem:[%s198 + $0x550] sm:$0xff]
        %v388 = vld [vmem:[%s198 + $0x558] sm:$0xff]
        %v389 = vld [vmem:[%s198 + $0x560] sm:$0xff]
        %v390 = vld [vmem:[%s198 + $0x568] sm:$0xff]
        %v391 = vld [vmem:[%s198 + $0x570] sm:$0xff]
        %v392 = vld [vmem:[%s198 + $0x578] sm:$0xff]
        %v393 = vld [vmem:[%s198 + $0x580] sm:$0xff]
        %v394 = vld [vmem:[%s198 + $0x588] sm:$0xff]
        %v395 = vld [vmem:[%s198 + $0x590] sm:$0xff]
        %v396 = vld [vmem:[%s198 + $0x598] sm:$0xff]
        %v397 = vld [vmem:[%s198 + $0x5a0] sm:$0xff]
        %v398 = vld [vmem:[%s198 + $0x5a8] sm:$0xff]
        %v399 = vld [vmem:[%s198 + $0x5b0] sm:$0xff]
        %v400 = vld [vmem:[%s198 + $0x5b8] sm:$0xff]
        %v401 = vld [vmem:[%s198 + $0x5c0] sm:$0xff]
        %v402 = vld [vmem:[%s198 + $0x5c8] sm:$0xff]
        %v403 = vld [vmem:[%s198 + $0x5d0] sm:$0xff]
        %v404 = vld [vmem:[%s198 + $0x5d8] sm:$0xff]
        %v405 = vld [vmem:[%s198 + $0x5e0] sm:$0xff]
        %v406 = vld [vmem:[%s198 + $0x5e8] sm:$0xff]
        %v407 = vld [vmem:[%s198 + $0x5f0] sm:$0xff]
        %v408 = vld [vmem:[%s198 + $0x5f8] sm:$0xff]
        %v409 = vld [vmem:[%s198 + $0x600] sm:$0xff]
        %v410 = vld [vmem:[%s198 + $0x608] sm:$0xff]
        %v411 = vld [vmem:[%s198 + $0x610] sm:$0xff]
        %v412 = vld [vmem:[%s198 + $0x618] sm:$0xff]
        %v413 = vld [vmem:[%s198 + $0x620] sm:$0xff]
        %v414 = vld [vmem:[%s198 + $0x628] sm:$0xff]
        %v415 = vld [vmem:[%s198 + $0x630] sm:$0xff]
        %v416 = vld [vmem:[%s198 + $0x638] sm:$0xff]
        %v417 = vld [vmem:[%s198 + $0x640] sm:$0xff]
        %v418 = vld [vmem:[%s198 + $0x648] sm:$0xff]
        %v419 = vld [vmem:[%s198 + $0x650] sm:$0xff]
        %v420 = vld [vmem:[%s198 + $0x658] sm:$0xff]
        %v421 = vld [vmem:[%s198 + $0x660] sm:$0xff]
        %v422 = vld [vmem:[%s198 + $0x668] sm:$0xff]
        %v423 = vld [vmem:[%s198 + $0x670] sm:$0xff]
        %v424 = vld [vmem:[%s198 + $0x678] sm:$0xff]
        %v425 = vld [vmem:[%s198 + $0x680] sm:$0xff]
        %v426 = vld [vmem:[%s198 + $0x688] sm:$0xff]
        %v427 = vld [vmem:[%s198 + $0x690] sm:$0xff]
        %v428 = vld [vmem:[%s198 + $0x698] sm:$0xff]
        %v429 = vld [vmem:[%s198 + $0x6a0] sm:$0xff]
        %v430 = vld [vmem:[%s198 + $0x6a8] sm:$0xff]
        %v431 = vld [vmem:[%s198 + $0x6b0] sm:$0xff]
        %v432 = vld [vmem:[%s198 + $0x6b8] sm:$0xff]
        %v433 = vld [vmem:[%s198 + $0x6c0] sm:$0xff]
        %v434 = vld [vmem:[%s198 + $0x6c8] sm:$0xff]
        %v435 = vld [vmem:[%s198 + $0x6d0] sm:$0xff]
        %v436 = vld [vmem:[%s198 + $0x6d8] sm:$0xff]
        %v437 = vld [vmem:[%s198 + $0x6e0] sm:$0xff]
        %v438 = vld [vmem:[%s198 + $0x6e8] sm:$0xff]
        %v439 = vld [vmem:[%s198 + $0x6f0] sm:$0xff]
        %v440 = vld [vmem:[%s198 + $0x6f8] sm:$0xff]
        %v441 = vld [vmem:[%s198 + $0x700] sm:$0xff]
        %v442 = vld [vmem:[%s198 + $0x708] sm:$0xff]
        %v443 = vld [vmem:[%s198 + $0x710] sm:$0xff]
        %v444 = vld [vmem:[%s198 + $0x718] sm:$0xff]
        %v445 = vld [vmem:[%s198 + $0x720] sm:$0xff]
        %v446 = vld [vmem:[%s198 + $0x728] sm:$0xff]
        %v447 = vld [vmem:[%s198 + $0x730] sm:$0xff]
        %v448 = vld [vmem:[%s198 + $0x738] sm:$0xff]
        %v449 = vld [vmem:[%s198 + $0x740] sm:$0xff]
        %v450 = vld [vmem:[%s198 + $0x748] sm:$0xff]
        %v451 = vld [vmem:[%s198 + $0x750] sm:$0xff]
        %v452 = vld [vmem:[%s198 + $0x758] sm:$0xff]
        %v453 = vld [vmem:[%s198 + $0x760] sm:$0xff]
        %v454 = vld [vmem:[%s198 + $0x768] sm:$0xff]
        %v455 = vld [vmem:[%s198 + $0x770] sm:$0xff]
        %v456 = vld [vmem:[%s198 + $0x778] sm:$0xff]
        %v457 = vld [vmem:[%s198 + $0x780] sm:$0xff]
        %v458 = vld [vmem:[%s198 + $0x788] sm:$0xff]
        %v459 = vld [vmem:[%s198 + $0x790] sm:$0xff]
        %v460 = vld [vmem:[%s198 + $0x798] sm:$0xff]
        %v461 = vld [vmem:[%s198 + $0x7a0] sm:$0xff]
        %v462 = vld [vmem:[%s198 + $0x7a8] sm:$0xff]
        %v463 = vld [vmem:[%s198 + $0x7b0] sm:$0xff]
        %v464 = vld [vmem:[%s198 + $0x7b8] sm:$0xff]
        %v465 = vld [vmem:[%s198 + $0x7c0] sm:$0xff]
        %v466 = vld [vmem:[%s198 + $0x7c8] sm:$0xff]
        %v467 = vld [vmem:[%s198 + $0x7d0] sm:$0xff]
        %v468 = vld [vmem:[%s198 + $0x7d8] sm:$0xff]
        %v469 = vld [vmem:[%s198 + $0x7e0] sm:$0xff]
        %v470 = vld [vmem:[%s198 + $0x7e8] sm:$0xff]
        %v471 = vld [vmem:[%s198 + $0x7f0] sm:$0xff]
        %v472 = vld [vmem:[%s198 + $0x7f8] sm:$0xff]
        %v473 = vld [vmem:[%s198 + $0x800] sm:$0xff]
        %v474 = vld [vmem:[%s198 + $0x808] sm:$0xff]
        %v475 = vld [vmem:[%s198 + $0x810] sm:$0xff]
        %v476 = vld [vmem:[%s198 + $0x818] sm:$0xff]
        %v477 = vld [vmem:[%s198 + $0x820] sm:$0xff]
        %v478 = vld [vmem:[%s198 + $0x828] sm:$0xff]
        %v479 = vld [vmem:[%s198 + $0x830] sm:$0xff]
        %v480 = vld [vmem:[%s198 + $0x838] sm:$0xff]
        %v481 = vld [vmem:[%s198 + $0x840] sm:$0xff]
        %v482 = vld [vmem:[%s198 + $0x848] sm:$0xff]
        %v483 = vld [vmem:[%s198 + $0x850] sm:$0xff]
        %v484 = vld [vmem:[%s198 + $0x858] sm:$0xff]
        %v485 = vld [vmem:[%s198 + $0x860] sm:$0xff]
        %v486 = vld [vmem:[%s198 + $0x868] sm:$0xff]
        %v487 = vld [vmem:[%s198 + $0x870] sm:$0xff]
        %v488 = vld [vmem:[%s198 + $0x878] sm:$0xff]
        %v489 = vld [vmem:[%s198 + $0x880] sm:$0xff]
        %v490 = vld [vmem:[%s198 + $0x888] sm:$0xff]
        %v491 = vld [vmem:[%s198 + $0x890] sm:$0xff]
        %v492 = vld [vmem:[%s198 + $0x898] sm:$0xff]
        %v493 = vld [vmem:[%s198 + $0x8a0] sm:$0xff]
        %v494 = vld [vmem:[%s198 + $0x8a8] sm:$0xff]
        %v495 = vld [vmem:[%s198 + $0x8b0] sm:$0xff]
        %v496 = vld [vmem:[%s198 + $0x8b8] sm:$0xff]
        %v497 = vld [vmem:[%s198 + $0x8c0] sm:$0xff]
        %v498 = vld [vmem:[%s198 + $0x8c8] sm:$0xff]
        %v499 = vld [vmem:[%s198 + $0x8d0] sm:$0xff]
        %v500 = vld [vmem:[%s198 + $0x8d8] sm:$0xff]
        %v501 = vld [vmem:[%s198 + $0x8e0] sm:$0xff]
        %v502 = vld [vmem:[%s198 + $0x8e8] sm:$0xff]
        %v503 = vld [vmem:[%s198 + $0x8f0] sm:$0xff]
        %v504 = vld [vmem:[%s198 + $0x8f8] sm:$0xff]
        %v505 = vld [vmem:[%s198 + $0x900] sm:$0xff]
        %v506 = vld [vmem:[%s198 + $0x908] sm:$0xff]
        %v507 = vld [vmem:[%s198 + $0x910] sm:$0xff]
        %v508 = vld [vmem:[%s198 + $0x918] sm:$0xff]
        %v509 = vld [vmem:[%s198 + $0x920] sm:$0xff]
        %v510 = vld [vmem:[%s198 + $0x928] sm:$0xff]
        %v511 = vld [vmem:[%s198 + $0x930] sm:$0xff]
        %v512 = vld [vmem:[%s198 + $0x938] sm:$0xff]
        %v513 = vld [vmem:[%s198 + $0x940] sm:$0xff]
        %v514 = vld [vmem:[%s198 + $0x948] sm:$0xff]
        %v515 = vld [vmem:[%s198 + $0x950] sm:$0xff]
        %v516 = vld [vmem:[%s198 + $0x958] sm:$0xff]
        %v517 = vld [vmem:[%s198 + $0x960] sm:$0xff]
        %v518 = vld [vmem:[%s198 + $0x968] sm:$0xff]
        %v519 = vld [vmem:[%s198 + $0x970] sm:$0xff]
        %v520 = vld [vmem:[%s198 + $0x978] sm:$0xff]
        %v521 = vld [vmem:[%s198 + $0x980] sm:$0xff]
        %v522 = vld [vmem:[%s198 + $0x988] sm:$0xff]
        %v523 = vld [vmem:[%s198 + $0x990] sm:$0xff]
        %v524 = vld [vmem:[%s198 + $0x998] sm:$0xff]
        %v525 = vld [vmem:[%s198 + $0x9a0] sm:$0xff]
        %v526 = vld [vmem:[%s198 + $0x9a8] sm:$0xff]
        %v527 = vld [vmem:[%s198 + $0x9b0] sm:$0xff]
        %v528 = vld [vmem:[%s198 + $0x9b8] sm:$0xff]
        %v529 = vld [vmem:[%s198 + $0x9c0] sm:$0xff]
        %v530 = vld [vmem:[%s198 + $0x9c8] sm:$0xff]
        %v531 = vld [vmem:[%s198 + $0x9d0] sm:$0xff]
        %v532 = vld [vmem:[%s198 + $0x9d8] sm:$0xff]
        %v533 = vld [vmem:[%s198 + $0x9e0] sm:$0xff]
        %v534 = vld [vmem:[%s198 + $0x9e8] sm:$0xff]
        %v535 = vld [vmem:[%s198 + $0x9f0] sm:$0xff]
        %v536 = vld [vmem:[%s198 + $0x9f8] sm:$0xff]
        %v537 = vld [vmem:[%s198 + $0xa00] sm:$0xff]
        %v538 = vld [vmem:[%s198 + $0xa08] sm:$0xff]
        %v539 = vld [vmem:[%s198 + $0xa10] sm:$0xff]
        %v540 = vld [vmem:[%s198 + $0xa18] sm:$0xff]
        %v541 = vld [vmem:[%s198 + $0xa20] sm:$0xff]
        %v542 = vld [vmem:[%s198 + $0xa28] sm:$0xff]
        %v543 = vld [vmem:[%s198 + $0xa30] sm:$0xff]
        %v544 = vld [vmem:[%s198 + $0xa38] sm:$0xff]
        %v545 = vld [vmem:[%s198 + $0xa40] sm:$0xff]
        %v546 = vld [vmem:[%s198 + $0xa48] sm:$0xff]
        %v547 = vld [vmem:[%s198 + $0xa50] sm:$0xff]
        %v548 = vld [vmem:[%s198 + $0xa58] sm:$0xff]
        %v549 = vld [vmem:[%s198 + $0xa60] sm:$0xff]
        %v550 = vld [vmem:[%s198 + $0xa68] sm:$0xff]
        %v551 = vld [vmem:[%s198 + $0xa70] sm:$0xff]
        %v552 = vld [vmem:[%s198 + $0xa78] sm:$0xff]
        %v553 = vld [vmem:[%s198 + $0xa80] sm:$0xff]
        %v554 = vld [vmem:[%s198 + $0xa88] sm:$0xff]
        %v555 = vld [vmem:[%s198 + $0xa90] sm:$0xff]
        %v556 = vld [vmem:[%s198 + $0xa98] sm:$0xff]
        %v557 = vld [vmem:[%s198 + $0xaa0] sm:$0xff]
        %v558 = vld [vmem:[%s198 + $0xaa8] sm:$0xff]
        %v559 = vld [vmem:[%s198 + $0xab0] sm:$0xff]
        %v560 = vld [vmem:[%s198 + $0xab8] sm:$0xff]
        %v561 = vld [vmem:[%s198 + $0xac0] sm:$0xff]
        %v562 = vld [vmem:[%s198 + $0xac8] sm:$0xff]
        %v563 = vld [vmem:[%s198 + $0xad0] sm:$0xff]
        %v564 = vld [vmem:[%s198 + $0xad8] sm:$0xff]
        %v565 = vld [vmem:[%s198 + $0xae0] sm:$0xff]
        %v566 = vld [vmem:[%s198 + $0xae8] sm:$0xff]
        %v567 = vld [vmem:[%s198 + $0xaf0] sm:$0xff]
        %v568 = vld [vmem:[%s198 + $0xaf8] sm:$0xff]
        %v569 = vld [vmem:[%s198 + $0xb00] sm:$0xff]
        %v570 = vld [vmem:[%s198 + $0xb08] sm:$0xff]
        %v571 = vld [vmem:[%s198 + $0xb10] sm:$0xff]
        %v572 = vld [vmem:[%s198 + $0xb18] sm:$0xff]
        %v573 = vld [vmem:[%s198 + $0xb20] sm:$0xff]
        %v574 = vld [vmem:[%s198 + $0xb28] sm:$0xff]
        %v575 = vld [vmem:[%s198 + $0xb30] sm:$0xff]
        %v576 = vld [vmem:[%s198 + $0xb38] sm:$0xff]
        %v577 = vld [vmem:[%s198 + $0xb40] sm:$0xff]
        %v578 = vld [vmem:[%s198 + $0xb48] sm:$0xff]
        %v579 = vld [vmem:[%s198 + $0xb50] sm:$0xff]
        %v580 = vld [vmem:[%s198 + $0xb58] sm:$0xff]
        %v581 = vld [vmem:[%s198 + $0xb60] sm:$0xff]
        %v582 = vld [vmem:[%s198 + $0xb68] sm:$0xff]
        %v583 = vld [vmem:[%s198 + $0xb70] sm:$0xff]
        %v584 = vld [vmem:[%s198 + $0xb78] sm:$0xff]
        %v585 = vld [vmem:[%s198 + $0xb80] sm:$0xff]
        %v586 = vld [vmem:[%s198 + $0xb88] sm:$0xff]
        %v587 = vld [vmem:[%s198 + $0xb90] sm:$0xff]
        %v588 = vld [vmem:[%s198 + $0xb98] sm:$0xff]
        %v589 = vld [vmem:[%s198 + $0xba0] sm:$0xff]
        %v590 = vld [vmem:[%s198 + $0xba8] sm:$0xff]
        %v591 = vld [vmem:[%s198 + $0xbb0] sm:$0xff]
        %v592 = vld [vmem:[%s198 + $0xbb8] sm:$0xff]
        %v593 = vld [vmem:[%s198 + $0xbc0] sm:$0xff]
        %v594 = vld [vmem:[%s198 + $0xbc8] sm:$0xff]
        %v595 = vld [vmem:[%s198 + $0xbd0] sm:$0xff]
        %v596 = vld [vmem:[%s198 + $0xbd8] sm:$0xff]
        %v597 = vld [vmem:[%s198 + $0xbe0] sm:$0xff]
        %v598 = vld [vmem:[%s198 + $0xbe8] sm:$0xff]
        %v599 = vld [vmem:[%s198 + $0xbf0] sm:$0xff]
        %v600 = vld [vmem:[%s198 + $0xbf8] sm:$0xff]
        %v601 = vld [vmem:[%s198 + $0xc00] sm:$0xff]
        %v602 = vld [vmem:[%s198 + $0xc08] sm:$0xff]
        %v603 = vld [vmem:[%s198 + $0xc10] sm:$0xff]
        %v604 = vld [vmem:[%s198 + $0xc18] sm:$0xff]
        %v605 = vld [vmem:[%s198 + $0xc20] sm:$0xff]
        %v606 = vld [vmem:[%s198 + $0xc28] sm:$0xff]
        %v607 = vld [vmem:[%s198 + $0xc30] sm:$0xff]
        %v608 = vld [vmem:[%s198 + $0xc38] sm:$0xff]
        %v609 = vld [vmem:[%s198 + $0xc40] sm:$0xff]
        %v610 = vld [vmem:[%s198 + $0xc48] sm:$0xff]
        %v611 = vld [vmem:[%s198 + $0xc50] sm:$0xff]
        %v612 = vld [vmem:[%s198 + $0xc58] sm:$0xff]
        %v613 = vld [vmem:[%s198 + $0xc60] sm:$0xff]
        %v614 = vld [vmem:[%s198 + $0xc68] sm:$0xff]
        %v615 = vld [vmem:[%s198 + $0xc70] sm:$0xff]
        %v616 = vld [vmem:[%s198 + $0xc78] sm:$0xff]
        %v617 = vld [vmem:[%s198 + $0xc80] sm:$0xff]
        %v618 = vld [vmem:[%s198 + $0xc88] sm:$0xff]
        %v619 = vld [vmem:[%s198 + $0xc90] sm:$0xff]
        %v620 = vld [vmem:[%s198 + $0xc98] sm:$0xff]
        %v621 = vld [vmem:[%s198 + $0xca0] sm:$0xff]
        %v622 = vld [vmem:[%s198 + $0xca8] sm:$0xff]
        %v623 = vld [vmem:[%s198 + $0xcb0] sm:$0xff]
        %v624 = vld [vmem:[%s198 + $0xcb8] sm:$0xff]
        %v625 = vld [vmem:[%s198 + $0xcc0] sm:$0xff]
        %v626 = vld [vmem:[%s198 + $0xcc8] sm:$0xff]
        %v627 = vld [vmem:[%s198 + $0xcd0] sm:$0xff]
        %v628 = vld [vmem:[%s198 + $0xcd8] sm:$0xff]
        %v629 = vld [vmem:[%s198 + $0xce0] sm:$0xff]
        %v630 = vld [vmem:[%s198 + $0xce8] sm:$0xff]
        %v631 = vld [vmem:[%s198 + $0xcf0] sm:$0xff]
        %v632 = vld [vmem:[%s198 + $0xcf8] sm:$0xff]
        %v633 = vld [vmem:[%s198 + $0xd00] sm:$0xff]
        %v634 = vld [vmem:[%s198 + $0xd08] sm:$0xff]
        %v635 = vld [vmem:[%s198 + $0xd10] sm:$0xff]
        %v636 = vld [vmem:[%s198 + $0xd18] sm:$0xff]
        %v637 = vld [vmem:[%s198 + $0xd20] sm:$0xff]
        %v638 = vld [vmem:[%s198 + $0xd28] sm:$0xff]
        %v639 = vld [vmem:[%s198 + $0xd30] sm:$0xff]
        %v640 = vld [vmem:[%s198 + $0xd38] sm:$0xff]
        %v641 = vld [vmem:[%s198 + $0xd40] sm:$0xff]
        %v642 = vld [vmem:[%s198 + $0xd48] sm:$0xff]
        %v643 = vld [vmem:[%s198 + $0xd50] sm:$0xff]
        %v644 = vld [vmem:[%s198 + $0xd58] sm:$0xff]
        %v645 = vld [vmem:[%s198 + $0xd60] sm:$0xff]
        %v646 = vld [vmem:[%s198 + $0xd68] sm:$0xff]
        %v647 = vld [vmem:[%s198 + $0xd70] sm:$0xff]
        %v648 = vld [vmem:[%s198 + $0xd78] sm:$0xff]
        %v649 = vld [vmem:[%s198 + $0xd80] sm:$0xff]
        %v650 = vld [vmem:[%s198 + $0xd88] sm:$0xff]
        %v651 = vld [vmem:[%s198 + $0xd90] sm:$0xff]
        %v652 = vld [vmem:[%s198 + $0xd98] sm:$0xff]
        %v653 = vld [vmem:[%s198 + $0xda0] sm:$0xff]
        %v654 = vld [vmem:[%s198 + $0xda8] sm:$0xff]
        %v655 = vld [vmem:[%s198 + $0xdb0] sm:$0xff]
        %v656 = vld [vmem:[%s198 + $0xdb8] sm:$0xff]
        %v657 = vld [vmem:[%s198 + $0xdc0] sm:$0xff]
        %v658 = vld [vmem:[%s198 + $0xdc8] sm:$0xff]
        %v659 = vld [vmem:[%s198 + $0xdd0] sm:$0xff]
        %v660 = vld [vmem:[%s198 + $0xdd8] sm:$0xff]
        %v661 = vld [vmem:[%s198 + $0xde0] sm:$0xff]
        %v662 = vld [vmem:[%s198 + $0xde8] sm:$0xff]
        %v663 = vld [vmem:[%s198 + $0xdf0] sm:$0xff]
        %v664 = vld [vmem:[%s198 + $0xdf8] sm:$0xff]
        %v665 = vld [vmem:[%s198 + $0xe00] sm:$0xff]
        %v666 = vld [vmem:[%s198 + $0xe08] sm:$0xff]
        %v667 = vld [vmem:[%s198 + $0xe10] sm:$0xff]
        %v668 = vld [vmem:[%s198 + $0xe18] sm:$0xff]
        %v669 = vld [vmem:[%s198 + $0xe20] sm:$0xff]
        %v670 = vld [vmem:[%s198 + $0xe28] sm:$0xff]
        %v671 = vld [vmem:[%s198 + $0xe30] sm:$0xff]
        %v672 = vld [vmem:[%s198 + $0xe38] sm:$0xff]
        %v673 = vld [vmem:[%s198 + $0xe40] sm:$0xff]
        %v674 = vld [vmem:[%s198 + $0xe48] sm:$0xff]
        %v675 = vld [vmem:[%s198 + $0xe50] sm:$0xff]
        %v676 = vld [vmem:[%s198 + $0xe58] sm:$0xff]
        %v677 = vld [vmem:[%s198 + $0xe60] sm:$0xff]
        %v678 = vld [vmem:[%s198 + $0xe68] sm:$0xff]
        %v679 = vld [vmem:[%s198 + $0xe70] sm:$0xff]
        %v680 = vld [vmem:[%s198 + $0xe78] sm:$0xff]
        %v681 = vld [vmem:[%s198 + $0xe80] sm:$0xff]
        %v682 = vld [vmem:[%s198 + $0xe88] sm:$0xff]
        %v683 = vld [vmem:[%s198 + $0xe90] sm:$0xff]
        %v684 = vld [vmem:[%s198 + $0xe98] sm:$0xff]
        %v685 = vld [vmem:[%s198 + $0xea0] sm:$0xff]
        %v686 = vld [vmem:[%s198 + $0xea8] sm:$0xff]
        %v687 = vld [vmem:[%s198 + $0xeb0] sm:$0xff]
        %v688 = vld [vmem:[%s198 + $0xeb8] sm:$0xff]
        %v689 = vld [vmem:[%s198 + $0xec0] sm:$0xff]
        %v690 = vld [vmem:[%s198 + $0xec8] sm:$0xff]
        %v691 = vld [vmem:[%s198 + $0xed0] sm:$0xff]
        %v692 = vld [vmem:[%s198 + $0xed8] sm:$0xff]
        %v693 = vld [vmem:[%s198 + $0xee0] sm:$0xff]
        %v694 = vld [vmem:[%s198 + $0xee8] sm:$0xff]
        %v695 = vld [vmem:[%s198 + $0xef0] sm:$0xff]
        %v696 = vld [vmem:[%s198 + $0xef8] sm:$0xff]
        %v697 = vld [vmem:[%s198 + $0xf00] sm:$0xff]
        %v698 = vld [vmem:[%s198 + $0xf08] sm:$0xff]
        %v699 = vld [vmem:[%s198 + $0xf10] sm:$0xff]
        %v700 = vld [vmem:[%s198 + $0xf18] sm:$0xff]
        %v701 = vld [vmem:[%s198 + $0xf20] sm:$0xff]
        %v702 = vld [vmem:[%s198 + $0xf28] sm:$0xff]
        %v703 = vld [vmem:[%s198 + $0xf30] sm:$0xff]
        %v704 = vld [vmem:[%s198 + $0xf38] sm:$0xff]
        %v705 = vld [vmem:[%s198 + $0xf40] sm:$0xff]
        %v706 = vld [vmem:[%s198 + $0xf48] sm:$0xff]
        %v707 = vld [vmem:[%s198 + $0xf50] sm:$0xff]
        %v708 = vld [vmem:[%s198 + $0xf58] sm:$0xff]
        %v709 = vld [vmem:[%s198 + $0xf60] sm:$0xff]
        %v710 = vld [vmem:[%s198 + $0xf68] sm:$0xff]
        %v711 = vld [vmem:[%s198 + $0xf70] sm:$0xff]
        %v712 = vld [vmem:[%s198 + $0xf78] sm:$0xff]
        %v713 = vld [vmem:[%s198 + $0xf80] sm:$0xff]
        %v714 = vld [vmem:[%s198 + $0xf88] sm:$0xff]
        %v715 = vld [vmem:[%s198 + $0xf90] sm:$0xff]
        %v716 = vld [vmem:[%s198 + $0xf98] sm:$0xff]
        %v717 = vld [vmem:[%s198 + $0xfa0] sm:$0xff]
        %v718 = vld [vmem:[%s198 + $0xfa8] sm:$0xff]
        %v719 = vld [vmem:[%s198 + $0xfb0] sm:$0xff]
        %v720 = vld [vmem:[%s198 + $0xfb8] sm:$0xff]
        %v721 = vld [vmem:[%s198 + $0xfc0] sm:$0xff]
        %v722 = vld [vmem:[%s198 + $0xfc8] sm:$0xff]
        %v723 = vld [vmem:[%s198 + $0xfd0] sm:$0xff]
        %v724 = vld [vmem:[%s198 + $0xfd8] sm:$0xff]
        %v725 = vld [vmem:[%s198 + $0xfe0] sm:$0xff]
        %v726 = vld [vmem:[%s198 + $0xfe8] sm:$0xff]
        %v727 = vld [vmem:[%s198 + $0xff0] sm:$0xff]
        %v728 = vld [vmem:[%s198 + $0xff8] sm:$0xff]
        %v729 = vld [vmem:[%s198 + $0x1000] sm:$0xff]
        %v730 = vld [vmem:[%s198 + $0x1008] sm:$0xff]
        %v731 = vld [vmem:[%s198 + $0x1010] sm:$0xff]
        %v732 = vld [vmem:[%s198 + $0x1018] sm:$0xff]
        %v733 = vld [vmem:[%s198 + $0x1020] sm:$0xff]
        %v734 = vld [vmem:[%s198 + $0x1028] sm:$0xff]
        %v735 = vld [vmem:[%s198 + $0x1030] sm:$0xff]
        %v736 = vld [vmem:[%s198 + $0x1038] sm:$0xff]
        %v737 = vld [vmem:[%s198 + $0x1040] sm:$0xff]
        %v738 = vld [vmem:[%s198 + $0x1048] sm:$0xff]
        %v739 = vld [vmem:[%s198 + $0x1050] sm:$0xff]
        %v740 = vld [vmem:[%s198 + $0x1058] sm:$0xff]
        %v741 = vld [vmem:[%s198 + $0x1060] sm:$0xff]
        %v742 = vld [vmem:[%s198 + $0x1068] sm:$0xff]
        %v743 = vld [vmem:[%s198 + $0x1070] sm:$0xff]
        %v744 = vld [vmem:[%s198 + $0x1078] sm:$0xff]
        %v745 = vld [vmem:[%s198 + $0x1080] sm:$0xff]
        %v746 = vld [vmem:[%s198 + $0x1088] sm:$0xff]
        %v747 = vld [vmem:[%s198 + $0x1090] sm:$0xff]
        %v748 = vld [vmem:[%s198 + $0x1098] sm:$0xff]
        %v749 = vld [vmem:[%s198 + $0x10a0] sm:$0xff]
        %v750 = vld [vmem:[%s198 + $0x10a8] sm:$0xff]
        %v751 = vld [vmem:[%s198 + $0x10b0] sm:$0xff]
        %v752 = vld [vmem:[%s198 + $0x10b8] sm:$0xff]
        %v753 = vld [vmem:[%s198 + $0x10c0] sm:$0xff]
        %v754 = vld [vmem:[%s198 + $0x10c8] sm:$0xff]
        %v755 = vld [vmem:[%s198 + $0x10d0] sm:$0xff]
        %v756 = vld [vmem:[%s198 + $0x10d8] sm:$0xff]
        %v757 = vld [vmem:[%s198 + $0x10e0] sm:$0xff]
        %v758 = vld [vmem:[%s198 + $0x10e8] sm:$0xff]
        %v759 = vld [vmem:[%s198 + $0x10f0] sm:$0xff]
        %v760 = vld [vmem:[%s198 + $0x10f8] sm:$0xff]
        %v761 = vld [vmem:[%s198 + $0x1100] sm:$0xff]
        %v762 = vld [vmem:[%s198 + $0x1108] sm:$0xff]
        %v763 = vld [vmem:[%s198 + $0x1110] sm:$0xff]
        %v764 = vld [vmem:[%s198 + $0x1118] sm:$0xff]
        %v765 = vld [vmem:[%s198 + $0x1120] sm:$0xff]
        %v766 = vld [vmem:[%s198 + $0x1128] sm:$0xff]
        %v767 = vld [vmem:[%s198 + $0x1130] sm:$0xff]
        %v768 = vld [vmem:[%s198 + $0x1138] sm:$0xff]
        %v769 = vld [vmem:[%s198 + $0x1140] sm:$0xff]
        %v770 = vld [vmem:[%s198 + $0x1148] sm:$0xff]
        %v771 = vld [vmem:[%s198 + $0x1150] sm:$0xff]
        %v772 = vld [vmem:[%s198 + $0x1158] sm:$0xff]
        %v773 = vld [vmem:[%s198 + $0x1160] sm:$0xff]
        %v774 = vld [vmem:[%s198 + $0x1168] sm:$0xff]
        %v775 = vld [vmem:[%s198 + $0x1170] sm:$0xff]
        %v776 = vld [vmem:[%s198 + $0x1178] sm:$0xff]
        %v777 = vld [vmem:[%s198 + $0x1180] sm:$0xff]
        %v778 = vld [vmem:[%s198 + $0x1188] sm:$0xff]
        %v779 = vld [vmem:[%s198 + $0x1190] sm:$0xff]
        %v780 = vld [vmem:[%s198 + $0x1198] sm:$0xff]
        %v781 = vld [vmem:[%s198 + $0x11a0] sm:$0xff]
        %v782 = vld [vmem:[%s198 + $0x11a8] sm:$0xff]
        %v783 = vld [vmem:[%s198 + $0x11b0] sm:$0xff]
        %v784 = vld [vmem:[%s198 + $0x11b8] sm:$0xff]
        %v785 = vld [vmem:[%s198 + $0x11c0] sm:$0xff]
        %v786 = vld [vmem:[%s198 + $0x11c8] sm:$0xff]
        %v787 = vld [vmem:[%s198 + $0x11d0] sm:$0xff]
        %v788 = vld [vmem:[%s198 + $0x11d8] sm:$0xff]
        %v789 = vld [vmem:[%s198 + $0x11e0] sm:$0xff]
        %v790 = vld [vmem:[%s198 + $0x11e8] sm:$0xff]
        %v791 = vld [vmem:[%s198 + $0x11f0] sm:$0xff]
        %v792 = vld [vmem:[%s198 + $0x11f8] sm:$0xff]
        %793 = vxpose.xlu0.b32.start [1/16] %v217, 128
        %794 = vxpose.xlu0.b32.cont [2/16] %v220, 128
        %795 = vxpose.xlu0.b32.cont [3/16] %v223, 128
        %796 = vxpose.xlu0.b32.cont [4/16] %v226, 128
        %797 = vxpose.xlu0.b32.cont [5/16] %v229, 128
        %798 = vxpose.xlu0.b32.cont [6/16] %v232, 128
        %799 = vxpose.xlu0.b32.cont [7/16] %v235, 128
        %800 = vxpose.xlu0.b32.cont [8/16] %v238, 128
        %801 = vxpose.xlu0.b32.cont [9/16] %v241, 128
        %802 = vxpose.xlu0.b32.cont [10/16] %v244, 128
        %803 = vxpose.xlu0.b32.cont [11/16] %v247, 128
        %804 = vxpose.xlu0.b32.cont [12/16] %v250, 128
        %805 = vxpose.xlu0.b32.cont [13/16] %v253, 128
        %806 = vxpose.xlu0.b32.cont [14/16] %v256, 128
        %807 = vxpose.xlu0.b32.cont [15/16] %v259, 128
        %808 = vxpose.xlu0.b32.end [16/16] %v262, 128
        %v809 = vpop.trf.xlu0
        %v810 = vpop.trf.xlu0
        %v811 = vpop.trf.xlu0
        %v812 = vpop.trf.xlu0
        %v813 = vpop.trf.xlu0
        %v814 = vpop.trf.xlu0
        %v815 = vpop.trf.xlu0
        %v816 = vpop.trf.xlu0
        %v817 = vpop.trf.xlu0
        %v818 = vpop.trf.xlu0
        %v819 = vpop.trf.xlu0
        %v820 = vpop.trf.xlu0
        %v821 = vpop.trf.xlu0
        %v822 = vpop.trf.xlu0
        %v823 = vpop.trf.xlu0
        %v824 = vpop.trf.xlu0
        %825 = vxpose.xlu0.b32.start [1/16] %v218, 128
        %826 = vxpose.xlu0.b32.cont [2/16] %v221, 128
        %827 = vxpose.xlu0.b32.cont [3/16] %v224, 128
        %828 = vxpose.xlu0.b32.cont [4/16] %v227, 128
        %829 = vxpose.xlu0.b32.cont [5/16] %v230, 128
        %830 = vxpose.xlu0.b32.cont [6/16] %v233, 128
        %831 = vxpose.xlu0.b32.cont [7/16] %v236, 128
        %832 = vxpose.xlu0.b32.cont [8/16] %v239, 128
        %833 = vxpose.xlu0.b32.cont [9/16] %v242, 128
        %834 = vxpose.xlu0.b32.cont [10/16] %v245, 128
        %835 = vxpose.xlu0.b32.cont [11/16] %v248, 128
        %836 = vxpose.xlu0.b32.cont [12/16] %v251, 128
        %837 = vxpose.xlu0.b32.cont [13/16] %v254, 128
        %838 = vxpose.xlu0.b32.cont [14/16] %v257, 128
        %839 = vxpose.xlu0.b32.cont [15/16] %v260, 128
        %840 = vxpose.xlu0.b32.end [16/16] %v263, 128
        %v841 = vpop.trf.xlu0
        %v842 = vpop.trf.xlu0
        %v843 = vpop.trf.xlu0
        %v844 = vpop.trf.xlu0
        %v845 = vpop.trf.xlu0
        %v846 = vpop.trf.xlu0
        %v847 = vpop.trf.xlu0
        %v848 = vpop.trf.xlu0
        %v849 = vpop.trf.xlu0
        %v850 = vpop.trf.xlu0
        %v851 = vpop.trf.xlu0
        %v852 = vpop.trf.xlu0
        %v853 = vpop.trf.xlu0
        %v854 = vpop.trf.xlu0
        %v855 = vpop.trf.xlu0
        %v856 = vpop.trf.xlu0
        %857 = vxpose.xlu0.b32.start [1/16] %v219, 128
        %858 = vxpose.xlu0.b32.cont [2/16] %v222, 128
        %859 = vxpose.xlu0.b32.cont [3/16] %v225, 128
        %860 = vxpose.xlu0.b32.cont [4/16] %v228, 128
        %861 = vxpose.xlu0.b32.cont [5/16] %v231, 128
        %862 = vxpose.xlu0.b32.cont [6/16] %v234, 128
        %863 = vxpose.xlu0.b32.cont [7/16] %v237, 128
        %864 = vxpose.xlu0.b32.cont [8/16] %v240, 128
        %865 = vxpose.xlu0.b32.cont [9/16] %v243, 128
        %866 = vxpose.xlu0.b32.cont [10/16] %v246, 128
        %867 = vxpose.xlu0.b32.cont [11/16] %v249, 128
        %868 = vxpose.xlu0.b32.cont [12/16] %v252, 128
        %869 = vxpose.xlu0.b32.cont [13/16] %v255, 128
        %870 = vxpose.xlu0.b32.cont [14/16] %v258, 128
        %871 = vxpose.xlu0.b32.cont [15/16] %v261, 128
        %872 = vxpose.xlu0.b32.end [16/16] %v264, 128
        %v873 = vpop.trf.xlu0
        %v874 = vpop.trf.xlu0
        %v875 = vpop.trf.xlu0
        %v876 = vpop.trf.xlu0
        %v877 = vpop.trf.xlu0
        %v878 = vpop.trf.xlu0
        %v879 = vpop.trf.xlu0
        %v880 = vpop.trf.xlu0
        %v881 = vpop.trf.xlu0
        %v882 = vpop.trf.xlu0
        %v883 = vpop.trf.xlu0
        %v884 = vpop.trf.xlu0
        %v885 = vpop.trf.xlu0
        %v886 = vpop.trf.xlu0
        %v887 = vpop.trf.xlu0
        %v888 = vpop.trf.xlu0
        %889 = vxpose.xlu0.b32.start [1/16] %v265, 128
        %890 = vxpose.xlu0.b32.cont [2/16] %v268, 128
        %891 = vxpose.xlu0.b32.cont [3/16] %v271, 128
        %892 = vxpose.xlu0.b32.cont [4/16] %v274, 128
        %893 = vxpose.xlu0.b32.cont [5/16] %v277, 128
        %894 = vxpose.xlu0.b32.cont [6/16] %v280, 128
        %895 = vxpose.xlu0.b32.cont [7/16] %v283, 128
        %896 = vxpose.xlu0.b32.cont [8/16] %v286, 128
        %897 = vxpose.xlu0.b32.cont [9/16] %v289, 128
        %898 = vxpose.xlu0.b32.cont [10/16] %v292, 128
        %899 = vxpose.xlu0.b32.cont [11/16] %v295, 128
        %900 = vxpose.xlu0.b32.cont [12/16] %v298, 128
        %901 = vxpose.xlu0.b32.cont [13/16] %v301, 128
        %902 = vxpose.xlu0.b32.cont [14/16] %v304, 128
        %903 = vxpose.xlu0.b32.cont [15/16] %v307, 128
        %904 = vxpose.xlu0.b32.end [16/16] %v310, 128
        %v905 = vpop.trf.xlu0
        %v906 = vpop.trf.xlu0
        %v907 = vpop.trf.xlu0
        %v908 = vpop.trf.xlu0
        %v909 = vpop.trf.xlu0
        %v910 = vpop.trf.xlu0
        %v911 = vpop.trf.xlu0
        %v912 = vpop.trf.xlu0
        %v913 = vpop.trf.xlu0
        %v914 = vpop.trf.xlu0
        %v915 = vpop.trf.xlu0
        %v916 = vpop.trf.xlu0
        %v917 = vpop.trf.xlu0
        %v918 = vpop.trf.xlu0
        %v919 = vpop.trf.xlu0
        %v920 = vpop.trf.xlu0
        %921 = vxpose.xlu0.b32.start [1/16] %v266, 128
        %922 = vxpose.xlu0.b32.cont [2/16] %v269, 128
        %923 = vxpose.xlu0.b32.cont [3/16] %v272, 128
        %924 = vxpose.xlu0.b32.cont [4/16] %v275, 128
        %925 = vxpose.xlu0.b32.cont [5/16] %v278, 128
        %926 = vxpose.xlu0.b32.cont [6/16] %v281, 128
        %927 = vxpose.xlu0.b32.cont [7/16] %v284, 128
        %928 = vxpose.xlu0.b32.cont [8/16] %v287, 128
        %929 = vxpose.xlu0.b32.cont [9/16] %v290, 128
        %930 = vxpose.xlu0.b32.cont [10/16] %v293, 128
        %931 = vxpose.xlu0.b32.cont [11/16] %v296, 128
        %932 = vxpose.xlu0.b32.cont [12/16] %v299, 128
        %933 = vxpose.xlu0.b32.cont [13/16] %v302, 128
        %934 = vxpose.xlu0.b32.cont [14/16] %v305, 128
        %935 = vxpose.xlu0.b32.cont [15/16] %v308, 128
        %936 = vxpose.xlu0.b32.end [16/16] %v311, 128
        %v937 = vpop.trf.xlu0
        %v938 = vpop.trf.xlu0
        %v939 = vpop.trf.xlu0
        %v940 = vpop.trf.xlu0
        %v941 = vpop.trf.xlu0
        %v942 = vpop.trf.xlu0
        %v943 = vpop.trf.xlu0
        %v944 = vpop.trf.xlu0
        %v945 = vpop.trf.xlu0
        %v946 = vpop.trf.xlu0
        %v947 = vpop.trf.xlu0
        %v948 = vpop.trf.xlu0
        %v949 = vpop.trf.xlu0
        %v950 = vpop.trf.xlu0
        %v951 = vpop.trf.xlu0
        %v952 = vpop.trf.xlu0
        %953 = vxpose.xlu0.b32.start [1/16] %v267, 128
        %954 = vxpose.xlu0.b32.cont [2/16] %v270, 128
        %955 = vxpose.xlu0.b32.cont [3/16] %v273, 128
        %956 = vxpose.xlu0.b32.cont [4/16] %v276, 128
        %957 = vxpose.xlu0.b32.cont [5/16] %v279, 128
        %958 = vxpose.xlu0.b32.cont [6/16] %v282, 128
        %959 = vxpose.xlu0.b32.cont [7/16] %v285, 128
        %960 = vxpose.xlu0.b32.cont [8/16] %v288, 128
        %961 = vxpose.xlu0.b32.cont [9/16] %v291, 128
        %962 = vxpose.xlu0.b32.cont [10/16] %v294, 128
        %963 = vxpose.xlu0.b32.cont [11/16] %v297, 128
        %964 = vxpose.xlu0.b32.cont [12/16] %v300, 128
        %965 = vxpose.xlu0.b32.cont [13/16] %v303, 128
        %966 = vxpose.xlu0.b32.cont [14/16] %v306, 128
        %967 = vxpose.xlu0.b32.cont [15/16] %v309, 128
        %968 = vxpose.xlu0.b32.end [16/16] %v312, 128
        %v969 = vpop.trf.xlu0
        %v970 = vpop.trf.xlu0
        %v971 = vpop.trf.xlu0
        %v972 = vpop.trf.xlu0
        %v973 = vpop.trf.xlu0
        %v974 = vpop.trf.xlu0
        %v975 = vpop.trf.xlu0
        %v976 = vpop.trf.xlu0
        %v977 = vpop.trf.xlu0
        %v978 = vpop.trf.xlu0
        %v979 = vpop.trf.xlu0
        %v980 = vpop.trf.xlu0
        %v981 = vpop.trf.xlu0
        %v982 = vpop.trf.xlu0
        %v983 = vpop.trf.xlu0
        %v984 = vpop.trf.xlu0
        %985 = vxpose.xlu0.b32.start [1/16] %v313, 128
        %986 = vxpose.xlu0.b32.cont [2/16] %v316, 128
        %987 = vxpose.xlu0.b32.cont [3/16] %v319, 128
        %988 = vxpose.xlu0.b32.cont [4/16] %v322, 128
        %989 = vxpose.xlu0.b32.cont [5/16] %v325, 128
        %990 = vxpose.xlu0.b32.cont [6/16] %v328, 128
        %991 = vxpose.xlu0.b32.cont [7/16] %v331, 128
        %992 = vxpose.xlu0.b32.cont [8/16] %v334, 128
        %993 = vxpose.xlu0.b32.cont [9/16] %v337, 128
        %994 = vxpose.xlu0.b32.cont [10/16] %v340, 128
        %995 = vxpose.xlu0.b32.cont [11/16] %v343, 128
        %996 = vxpose.xlu0.b32.cont [12/16] %v346, 128
        %997 = vxpose.xlu0.b32.cont [13/16] %v349, 128
        %998 = vxpose.xlu0.b32.cont [14/16] %v352, 128
        %999 = vxpose.xlu0.b32.cont [15/16] %v355, 128
        %1000 = vxpose.xlu0.b32.end [16/16] %v358, 128
        %v1001 = vpop.trf.xlu0
        %v1002 = vpop.trf.xlu0
        %v1003 = vpop.trf.xlu0
        %v1004 = vpop.trf.xlu0
        %v1005 = vpop.trf.xlu0
        %v1006 = vpop.trf.xlu0
        %v1007 = vpop.trf.xlu0
        %v1008 = vpop.trf.xlu0
        %v1009 = vpop.trf.xlu0
        %v1010 = vpop.trf.xlu0
        %v1011 = vpop.trf.xlu0
        %v1012 = vpop.trf.xlu0
        %v1013 = vpop.trf.xlu0
        %v1014 = vpop.trf.xlu0
        %v1015 = vpop.trf.xlu0
        %v1016 = vpop.trf.xlu0
        %1017 = vxpose.xlu0.b32.start [1/16] %v314, 128
        %1018 = vxpose.xlu0.b32.cont [2/16] %v317, 128
        %1019 = vxpose.xlu0.b32.cont [3/16] %v320, 128
        %1020 = vxpose.xlu0.b32.cont [4/16] %v323, 128
        %1021 = vxpose.xlu0.b32.cont [5/16] %v326, 128
        %1022 = vxpose.xlu0.b32.cont [6/16] %v329, 128
        %1023 = vxpose.xlu0.b32.cont [7/16] %v332, 128
        %1024 = vxpose.xlu0.b32.cont [8/16] %v335, 128
        %1025 = vxpose.xlu0.b32.cont [9/16] %v338, 128
        %1026 = vxpose.xlu0.b32.cont [10/16] %v341, 128
        %1027 = vxpose.xlu0.b32.cont [11/16] %v344, 128
        %1028 = vxpose.xlu0.b32.cont [12/16] %v347, 128
        %1029 = vxpose.xlu0.b32.cont [13/16] %v350, 128
        %1030 = vxpose.xlu0.b32.cont [14/16] %v353, 128
        %1031 = vxpose.xlu0.b32.cont [15/16] %v356, 128
        %1032 = vxpose.xlu0.b32.end [16/16] %v359, 128
        %v1033 = vpop.trf.xlu0
        %v1034 = vpop.trf.xlu0
        %v1035 = vpop.trf.xlu0
        %v1036 = vpop.trf.xlu0
        %v1037 = vpop.trf.xlu0
        %v1038 = vpop.trf.xlu0
        %v1039 = vpop.trf.xlu0
        %v1040 = vpop.trf.xlu0
        %v1041 = vpop.trf.xlu0
        %v1042 = vpop.trf.xlu0
        %v1043 = vpop.trf.xlu0
        %v1044 = vpop.trf.xlu0
        %v1045 = vpop.trf.xlu0
        %v1046 = vpop.trf.xlu0
        %v1047 = vpop.trf.xlu0
        %v1048 = vpop.trf.xlu0
        %1049 = vxpose.xlu0.b32.start [1/16] %v315, 128
        %1050 = vxpose.xlu0.b32.cont [2/16] %v318, 128
        %1051 = vxpose.xlu0.b32.cont [3/16] %v321, 128
        %1052 = vxpose.xlu0.b32.cont [4/16] %v324, 128
        %1053 = vxpose.xlu0.b32.cont [5/16] %v327, 128
        %1054 = vxpose.xlu0.b32.cont [6/16] %v330, 128
        %1055 = vxpose.xlu0.b32.cont [7/16] %v333, 128
        %1056 = vxpose.xlu0.b32.cont [8/16] %v336, 128
        %1057 = vxpose.xlu0.b32.cont [9/16] %v339, 128
        %1058 = vxpose.xlu0.b32.cont [10/16] %v342, 128
        %1059 = vxpose.xlu0.b32.cont [11/16] %v345, 128
        %1060 = vxpose.xlu0.b32.cont [12/16] %v348, 128
        %1061 = vxpose.xlu0.b32.cont [13/16] %v351, 128
        %1062 = vxpose.xlu0.b32.cont [14/16] %v354, 128
        %1063 = vxpose.xlu0.b32.cont [15/16] %v357, 128
        %1064 = vxpose.xlu0.b32.end [16/16] %v360, 128
        %v1065 = vpop.trf.xlu0
        %v1066 = vpop.trf.xlu0
        %v1067 = vpop.trf.xlu0
        %v1068 = vpop.trf.xlu0
        %v1069 = vpop.trf.xlu0
        %v1070 = vpop.trf.xlu0
        %v1071 = vpop.trf.xlu0
        %v1072 = vpop.trf.xlu0
        %v1073 = vpop.trf.xlu0
        %v1074 = vpop.trf.xlu0
        %v1075 = vpop.trf.xlu0
        %v1076 = vpop.trf.xlu0
        %v1077 = vpop.trf.xlu0
        %v1078 = vpop.trf.xlu0
        %v1079 = vpop.trf.xlu0
        %v1080 = vpop.trf.xlu0
        %1081 = vxpose.xlu0.b32.start [1/16] %v361, 128
        %1082 = vxpose.xlu0.b32.cont [2/16] %v364, 128
        %1083 = vxpose.xlu0.b32.cont [3/16] %v367, 128
        %1084 = vxpose.xlu0.b32.cont [4/16] %v370, 128
        %1085 = vxpose.xlu0.b32.cont [5/16] %v373, 128
        %1086 = vxpose.xlu0.b32.cont [6/16] %v376, 128
        %1087 = vxpose.xlu0.b32.cont [7/16] %v379, 128
        %1088 = vxpose.xlu0.b32.cont [8/16] %v382, 128
        %1089 = vxpose.xlu0.b32.cont [9/16] %v385, 128
        %1090 = vxpose.xlu0.b32.cont [10/16] %v388, 128
        %1091 = vxpose.xlu0.b32.cont [11/16] %v391, 128
        %1092 = vxpose.xlu0.b32.cont [12/16] %v394, 128
        %1093 = vxpose.xlu0.b32.cont [13/16] %v397, 128
        %1094 = vxpose.xlu0.b32.cont [14/16] %v400, 128
        %1095 = vxpose.xlu0.b32.cont [15/16] %v403, 128
        %1096 = vxpose.xlu0.b32.end [16/16] %v406, 128
        %v1097 = vpop.trf.xlu0
        %v1098 = vpop.trf.xlu0
        %v1099 = vpop.trf.xlu0
        %v1100 = vpop.trf.xlu0
        %v1101 = vpop.trf.xlu0
        %v1102 = vpop.trf.xlu0
        %v1103 = vpop.trf.xlu0
        %v1104 = vpop.trf.xlu0
        %v1105 = vpop.trf.xlu0
        %v1106 = vpop.trf.xlu0
        %v1107 = vpop.trf.xlu0
        %v1108 = vpop.trf.xlu0
        %v1109 = vpop.trf.xlu0
        %v1110 = vpop.trf.xlu0
        %v1111 = vpop.trf.xlu0
        %v1112 = vpop.trf.xlu0
        %1113 = vxpose.xlu0.b32.start [1/16] %v362, 128
        %1114 = vxpose.xlu0.b32.cont [2/16] %v365, 128
        %1115 = vxpose.xlu0.b32.cont [3/16] %v368, 128
        %1116 = vxpose.xlu0.b32.cont [4/16] %v371, 128
        %1117 = vxpose.xlu0.b32.cont [5/16] %v374, 128
        %1118 = vxpose.xlu0.b32.cont [6/16] %v377, 128
        %1119 = vxpose.xlu0.b32.cont [7/16] %v380, 128
        %1120 = vxpose.xlu0.b32.cont [8/16] %v383, 128
        %1121 = vxpose.xlu0.b32.cont [9/16] %v386, 128
        %1122 = vxpose.xlu0.b32.cont [10/16] %v389, 128
        %1123 = vxpose.xlu0.b32.cont [11/16] %v392, 128
        %1124 = vxpose.xlu0.b32.cont [12/16] %v395, 128
        %1125 = vxpose.xlu0.b32.cont [13/16] %v398, 128
        %1126 = vxpose.xlu0.b32.cont [14/16] %v401, 128
        %1127 = vxpose.xlu0.b32.cont [15/16] %v404, 128
        %1128 = vxpose.xlu0.b32.end [16/16] %v407, 128
        %v1129 = vpop.trf.xlu0
        %v1130 = vpop.trf.xlu0
        %v1131 = vpop.trf.xlu0
        %v1132 = vpop.trf.xlu0
        %v1133 = vpop.trf.xlu0
        %v1134 = vpop.trf.xlu0
        %v1135 = vpop.trf.xlu0
        %v1136 = vpop.trf.xlu0
        %v1137 = vpop.trf.xlu0
        %v1138 = vpop.trf.xlu0
        %v1139 = vpop.trf.xlu0
        %v1140 = vpop.trf.xlu0
        %v1141 = vpop.trf.xlu0
        %v1142 = vpop.trf.xlu0
        %v1143 = vpop.trf.xlu0
        %v1144 = vpop.trf.xlu0
        %1145 = vxpose.xlu0.b32.start [1/16] %v363, 128
        %1146 = vxpose.xlu0.b32.cont [2/16] %v366, 128
        %1147 = vxpose.xlu0.b32.cont [3/16] %v369, 128
        %1148 = vxpose.xlu0.b32.cont [4/16] %v372, 128
        %1149 = vxpose.xlu0.b32.cont [5/16] %v375, 128
        %1150 = vxpose.xlu0.b32.cont [6/16] %v378, 128
        %1151 = vxpose.xlu0.b32.cont [7/16] %v381, 128
        %1152 = vxpose.xlu0.b32.cont [8/16] %v384, 128
        %1153 = vxpose.xlu0.b32.cont [9/16] %v387, 128
        %1154 = vxpose.xlu0.b32.cont [10/16] %v390, 128
        %1155 = vxpose.xlu0.b32.cont [11/16] %v393, 128
        %1156 = vxpose.xlu0.b32.cont [12/16] %v396, 128
        %1157 = vxpose.xlu0.b32.cont [13/16] %v399, 128
        %1158 = vxpose.xlu0.b32.cont [14/16] %v402, 128
        %1159 = vxpose.xlu0.b32.cont [15/16] %v405, 128
        %1160 = vxpose.xlu0.b32.end [16/16] %v408, 128
        %v1161 = vpop.trf.xlu0
        %v1162 = vpop.trf.xlu0
        %v1163 = vpop.trf.xlu0
        %v1164 = vpop.trf.xlu0
        %v1165 = vpop.trf.xlu0
        %v1166 = vpop.trf.xlu0
        %v1167 = vpop.trf.xlu0
        %v1168 = vpop.trf.xlu0
        %v1169 = vpop.trf.xlu0
        %v1170 = vpop.trf.xlu0
        %v1171 = vpop.trf.xlu0
        %v1172 = vpop.trf.xlu0
        %v1173 = vpop.trf.xlu0
        %v1174 = vpop.trf.xlu0
        %v1175 = vpop.trf.xlu0
        %v1176 = vpop.trf.xlu0
        %1177 = vxpose.xlu0.b32.start [1/16] %v409, 128
        %1178 = vxpose.xlu0.b32.cont [2/16] %v412, 128
        %1179 = vxpose.xlu0.b32.cont [3/16] %v415, 128
        %1180 = vxpose.xlu0.b32.cont [4/16] %v418, 128
        %1181 = vxpose.xlu0.b32.cont [5/16] %v421, 128
        %1182 = vxpose.xlu0.b32.cont [6/16] %v424, 128
        %1183 = vxpose.xlu0.b32.cont [7/16] %v427, 128
        %1184 = vxpose.xlu0.b32.cont [8/16] %v430, 128
        %1185 = vxpose.xlu0.b32.cont [9/16] %v433, 128
        %1186 = vxpose.xlu0.b32.cont [10/16] %v436, 128
        %1187 = vxpose.xlu0.b32.cont [11/16] %v439, 128
        %1188 = vxpose.xlu0.b32.cont [12/16] %v442, 128
        %1189 = vxpose.xlu0.b32.cont [13/16] %v445, 128
        %1190 = vxpose.xlu0.b32.cont [14/16] %v448, 128
        %1191 = vxpose.xlu0.b32.cont [15/16] %v451, 128
        %1192 = vxpose.xlu0.b32.end [16/16] %v454, 128
        %v1193 = vpop.trf.xlu0
        %v1194 = vpop.trf.xlu0
        %v1195 = vpop.trf.xlu0
        %v1196 = vpop.trf.xlu0
        %v1197 = vpop.trf.xlu0
        %v1198 = vpop.trf.xlu0
        %v1199 = vpop.trf.xlu0
        %v1200 = vpop.trf.xlu0
        %v1201 = vpop.trf.xlu0
        %v1202 = vpop.trf.xlu0
        %v1203 = vpop.trf.xlu0
        %v1204 = vpop.trf.xlu0
        %v1205 = vpop.trf.xlu0
        %v1206 = vpop.trf.xlu0
        %v1207 = vpop.trf.xlu0
        %v1208 = vpop.trf.xlu0
        %1209 = vxpose.xlu0.b32.start [1/16] %v410, 128
        %1210 = vxpose.xlu0.b32.cont [2/16] %v413, 128
        %1211 = vxpose.xlu0.b32.cont [3/16] %v416, 128
        %1212 = vxpose.xlu0.b32.cont [4/16] %v419, 128
        %1213 = vxpose.xlu0.b32.cont [5/16] %v422, 128
        %1214 = vxpose.xlu0.b32.cont [6/16] %v425, 128
        %1215 = vxpose.xlu0.b32.cont [7/16] %v428, 128
        %1216 = vxpose.xlu0.b32.cont [8/16] %v431, 128
        %1217 = vxpose.xlu0.b32.cont [9/16] %v434, 128
        %1218 = vxpose.xlu0.b32.cont [10/16] %v437, 128
        %1219 = vxpose.xlu0.b32.cont [11/16] %v440, 128
        %1220 = vxpose.xlu0.b32.cont [12/16] %v443, 128
        %1221 = vxpose.xlu0.b32.cont [13/16] %v446, 128
        %1222 = vxpose.xlu0.b32.cont [14/16] %v449, 128
        %1223 = vxpose.xlu0.b32.cont [15/16] %v452, 128
        %1224 = vxpose.xlu0.b32.end [16/16] %v455, 128
        %v1225 = vpop.trf.xlu0
        %v1226 = vpop.trf.xlu0
        %v1227 = vpop.trf.xlu0
        %v1228 = vpop.trf.xlu0
        %v1229 = vpop.trf.xlu0
        %v1230 = vpop.trf.xlu0
        %v1231 = vpop.trf.xlu0
        %v1232 = vpop.trf.xlu0
        %v1233 = vpop.trf.xlu0
        %v1234 = vpop.trf.xlu0
        %v1235 = vpop.trf.xlu0
        %v1236 = vpop.trf.xlu0
        %v1237 = vpop.trf.xlu0
        %v1238 = vpop.trf.xlu0
        %v1239 = vpop.trf.xlu0
        %v1240 = vpop.trf.xlu0
        %1241 = vxpose.xlu0.b32.start [1/16] %v411, 128
        %1242 = vxpose.xlu0.b32.cont [2/16] %v414, 128
        %1243 = vxpose.xlu0.b32.cont [3/16] %v417, 128
        %1244 = vxpose.xlu0.b32.cont [4/16] %v420, 128
        %1245 = vxpose.xlu0.b32.cont [5/16] %v423, 128
        %1246 = vxpose.xlu0.b32.cont [6/16] %v426, 128
        %1247 = vxpose.xlu0.b32.cont [7/16] %v429, 128
        %1248 = vxpose.xlu0.b32.cont [8/16] %v432, 128
        %1249 = vxpose.xlu0.b32.cont [9/16] %v435, 128
        %1250 = vxpose.xlu0.b32.cont [10/16] %v438, 128
        %1251 = vxpose.xlu0.b32.cont [11/16] %v441, 128
        %1252 = vxpose.xlu0.b32.cont [12/16] %v444, 128
        %1253 = vxpose.xlu0.b32.cont [13/16] %v447, 128
        %1254 = vxpose.xlu0.b32.cont [14/16] %v450, 128
        %1255 = vxpose.xlu0.b32.cont [15/16] %v453, 128
        %1256 = vxpose.xlu0.b32.end [16/16] %v456, 128
        %v1257 = vpop.trf.xlu0
        %v1258 = vpop.trf.xlu0
        %v1259 = vpop.trf.xlu0
        %v1260 = vpop.trf.xlu0
        %v1261 = vpop.trf.xlu0
        %v1262 = vpop.trf.xlu0
        %v1263 = vpop.trf.xlu0
        %v1264 = vpop.trf.xlu0
        %v1265 = vpop.trf.xlu0
        %v1266 = vpop.trf.xlu0
        %v1267 = vpop.trf.xlu0
        %v1268 = vpop.trf.xlu0
        %v1269 = vpop.trf.xlu0
        %v1270 = vpop.trf.xlu0
        %v1271 = vpop.trf.xlu0
        %v1272 = vpop.trf.xlu0
        %1273 = vxpose.xlu0.b32.start [1/16] %v457, 128
        %1274 = vxpose.xlu0.b32.cont [2/16] %v460, 128
        %1275 = vxpose.xlu0.b32.cont [3/16] %v463, 128
        %1276 = vxpose.xlu0.b32.cont [4/16] %v466, 128
        %1277 = vxpose.xlu0.b32.cont [5/16] %v469, 128
        %1278 = vxpose.xlu0.b32.cont [6/16] %v472, 128
        %1279 = vxpose.xlu0.b32.cont [7/16] %v475, 128
        %1280 = vxpose.xlu0.b32.cont [8/16] %v478, 128
        %1281 = vxpose.xlu0.b32.cont [9/16] %v481, 128
        %1282 = vxpose.xlu0.b32.cont [10/16] %v484, 128
        %1283 = vxpose.xlu0.b32.cont [11/16] %v487, 128
        %1284 = vxpose.xlu0.b32.cont [12/16] %v490, 128
        %1285 = vxpose.xlu0.b32.cont [13/16] %v493, 128
        %1286 = vxpose.xlu0.b32.cont [14/16] %v496, 128
        %1287 = vxpose.xlu0.b32.cont [15/16] %v499, 128
        %1288 = vxpose.xlu0.b32.end [16/16] %v502, 128
        %v1289 = vpop.trf.xlu0
        %v1290 = vpop.trf.xlu0
        %v1291 = vpop.trf.xlu0
        %v1292 = vpop.trf.xlu0
        %v1293 = vpop.trf.xlu0
        %v1294 = vpop.trf.xlu0
        %v1295 = vpop.trf.xlu0
        %v1296 = vpop.trf.xlu0
        %v1297 = vpop.trf.xlu0
        %v1298 = vpop.trf.xlu0
        %v1299 = vpop.trf.xlu0
        %v1300 = vpop.trf.xlu0
        %v1301 = vpop.trf.xlu0
        %v1302 = vpop.trf.xlu0
        %v1303 = vpop.trf.xlu0
        %v1304 = vpop.trf.xlu0
        %1305 = vxpose.xlu0.b32.start [1/16] %v458, 128
        %1306 = vxpose.xlu0.b32.cont [2/16] %v461, 128
        %1307 = vxpose.xlu0.b32.cont [3/16] %v464, 128
        %1308 = vxpose.xlu0.b32.cont [4/16] %v467, 128
        %1309 = vxpose.xlu0.b32.cont [5/16] %v470, 128
        %1310 = vxpose.xlu0.b32.cont [6/16] %v473, 128
        %1311 = vxpose.xlu0.b32.cont [7/16] %v476, 128
        %1312 = vxpose.xlu0.b32.cont [8/16] %v479, 128
        %1313 = vxpose.xlu0.b32.cont [9/16] %v482, 128
        %1314 = vxpose.xlu0.b32.cont [10/16] %v485, 128
        %1315 = vxpose.xlu0.b32.cont [11/16] %v488, 128
        %1316 = vxpose.xlu0.b32.cont [12/16] %v491, 128
        %1317 = vxpose.xlu0.b32.cont [13/16] %v494, 128
        %1318 = vxpose.xlu0.b32.cont [14/16] %v497, 128
        %1319 = vxpose.xlu0.b32.cont [15/16] %v500, 128
        %1320 = vxpose.xlu0.b32.end [16/16] %v503, 128
        %v1321 = vpop.trf.xlu0
        %v1322 = vpop.trf.xlu0
        %v1323 = vpop.trf.xlu0
        %v1324 = vpop.trf.xlu0
        %v1325 = vpop.trf.xlu0
        %v1326 = vpop.trf.xlu0
        %v1327 = vpop.trf.xlu0
        %v1328 = vpop.trf.xlu0
        %v1329 = vpop.trf.xlu0
        %v1330 = vpop.trf.xlu0
        %v1331 = vpop.trf.xlu0
        %v1332 = vpop.trf.xlu0
        %v1333 = vpop.trf.xlu0
        %v1334 = vpop.trf.xlu0
        %v1335 = vpop.trf.xlu0
        %v1336 = vpop.trf.xlu0
        %1337 = vxpose.xlu0.b32.start [1/16] %v459, 128
        %1338 = vxpose.xlu0.b32.cont [2/16] %v462, 128
        %1339 = vxpose.xlu0.b32.cont [3/16] %v465, 128
        %1340 = vxpose.xlu0.b32.cont [4/16] %v468, 128
        %1341 = vxpose.xlu0.b32.cont [5/16] %v471, 128
        %1342 = vxpose.xlu0.b32.cont [6/16] %v474, 128
        %1343 = vxpose.xlu0.b32.cont [7/16] %v477, 128
        %1344 = vxpose.xlu0.b32.cont [8/16] %v480, 128
        %1345 = vxpose.xlu0.b32.cont [9/16] %v483, 128
        %1346 = vxpose.xlu0.b32.cont [10/16] %v486, 128
        %1347 = vxpose.xlu0.b32.cont [11/16] %v489, 128
        %1348 = vxpose.xlu0.b32.cont [12/16] %v492, 128
        %1349 = vxpose.xlu0.b32.cont [13/16] %v495, 128
        %1350 = vxpose.xlu0.b32.cont [14/16] %v498, 128
        %1351 = vxpose.xlu0.b32.cont [15/16] %v501, 128
        %1352 = vxpose.xlu0.b32.end [16/16] %v504, 128
        %v1353 = vpop.trf.xlu0
        %v1354 = vpop.trf.xlu0
        %v1355 = vpop.trf.xlu0
        %v1356 = vpop.trf.xlu0
        %v1357 = vpop.trf.xlu0
        %v1358 = vpop.trf.xlu0
        %v1359 = vpop.trf.xlu0
        %v1360 = vpop.trf.xlu0
        %v1361 = vpop.trf.xlu0
        %v1362 = vpop.trf.xlu0
        %v1363 = vpop.trf.xlu0
        %v1364 = vpop.trf.xlu0
        %v1365 = vpop.trf.xlu0
        %v1366 = vpop.trf.xlu0
        %v1367 = vpop.trf.xlu0
        %v1368 = vpop.trf.xlu0
        %1369 = vxpose.xlu0.b32.start [1/16] %v505, 128
        %1370 = vxpose.xlu0.b32.cont [2/16] %v508, 128
        %1371 = vxpose.xlu0.b32.cont [3/16] %v511, 128
        %1372 = vxpose.xlu0.b32.cont [4/16] %v514, 128
        %1373 = vxpose.xlu0.b32.cont [5/16] %v517, 128
        %1374 = vxpose.xlu0.b32.cont [6/16] %v520, 128
        %1375 = vxpose.xlu0.b32.cont [7/16] %v523, 128
        %1376 = vxpose.xlu0.b32.cont [8/16] %v526, 128
        %1377 = vxpose.xlu0.b32.cont [9/16] %v529, 128
        %1378 = vxpose.xlu0.b32.cont [10/16] %v532, 128
        %1379 = vxpose.xlu0.b32.cont [11/16] %v535, 128
        %1380 = vxpose.xlu0.b32.cont [12/16] %v538, 128
        %1381 = vxpose.xlu0.b32.cont [13/16] %v541, 128
        %1382 = vxpose.xlu0.b32.cont [14/16] %v544, 128
        %1383 = vxpose.xlu0.b32.cont [15/16] %v547, 128
        %1384 = vxpose.xlu0.b32.end [16/16] %v550, 128
        %v1385 = vpop.trf.xlu0
        %v1386 = vpop.trf.xlu0
        %v1387 = vpop.trf.xlu0
        %v1388 = vpop.trf.xlu0
        %v1389 = vpop.trf.xlu0
        %v1390 = vpop.trf.xlu0
        %v1391 = vpop.trf.xlu0
        %v1392 = vpop.trf.xlu0
        %v1393 = vpop.trf.xlu0
        %v1394 = vpop.trf.xlu0
        %v1395 = vpop.trf.xlu0
        %v1396 = vpop.trf.xlu0
        %v1397 = vpop.trf.xlu0
        %v1398 = vpop.trf.xlu0
        %v1399 = vpop.trf.xlu0
        %v1400 = vpop.trf.xlu0
        %1401 = vxpose.xlu0.b32.start [1/16] %v506, 128
        %1402 = vxpose.xlu0.b32.cont [2/16] %v509, 128
        %1403 = vxpose.xlu0.b32.cont [3/16] %v512, 128
        %1404 = vxpose.xlu0.b32.cont [4/16] %v515, 128
        %1405 = vxpose.xlu0.b32.cont [5/16] %v518, 128
        %1406 = vxpose.xlu0.b32.cont [6/16] %v521, 128
        %1407 = vxpose.xlu0.b32.cont [7/16] %v524, 128
        %1408 = vxpose.xlu0.b32.cont [8/16] %v527, 128
        %1409 = vxpose.xlu0.b32.cont [9/16] %v530, 128
        %1410 = vxpose.xlu0.b32.cont [10/16] %v533, 128
        %1411 = vxpose.xlu0.b32.cont [11/16] %v536, 128
        %1412 = vxpose.xlu0.b32.cont [12/16] %v539, 128
        %1413 = vxpose.xlu0.b32.cont [13/16] %v542, 128
        %1414 = vxpose.xlu0.b32.cont [14/16] %v545, 128
        %1415 = vxpose.xlu0.b32.cont [15/16] %v548, 128
        %1416 = vxpose.xlu0.b32.end [16/16] %v551, 128
        %v1417 = vpop.trf.xlu0
        %v1418 = vpop.trf.xlu0
        %v1419 = vpop.trf.xlu0
        %v1420 = vpop.trf.xlu0
        %v1421 = vpop.trf.xlu0
        %v1422 = vpop.trf.xlu0
        %v1423 = vpop.trf.xlu0
        %v1424 = vpop.trf.xlu0
        %v1425 = vpop.trf.xlu0
        %v1426 = vpop.trf.xlu0
        %v1427 = vpop.trf.xlu0
        %v1428 = vpop.trf.xlu0
        %v1429 = vpop.trf.xlu0
        %v1430 = vpop.trf.xlu0
        %v1431 = vpop.trf.xlu0
        %v1432 = vpop.trf.xlu0
        %1433 = vxpose.xlu0.b32.start [1/16] %v507, 128
        %1434 = vxpose.xlu0.b32.cont [2/16] %v510, 128
        %1435 = vxpose.xlu0.b32.cont [3/16] %v513, 128
        %1436 = vxpose.xlu0.b32.cont [4/16] %v516, 128
        %1437 = vxpose.xlu0.b32.cont [5/16] %v519, 128
        %1438 = vxpose.xlu0.b32.cont [6/16] %v522, 128
        %1439 = vxpose.xlu0.b32.cont [7/16] %v525, 128
        %1440 = vxpose.xlu0.b32.cont [8/16] %v528, 128
        %1441 = vxpose.xlu0.b32.cont [9/16] %v531, 128
        %1442 = vxpose.xlu0.b32.cont [10/16] %v534, 128
        %1443 = vxpose.xlu0.b32.cont [11/16] %v537, 128
        %1444 = vxpose.xlu0.b32.cont [12/16] %v540, 128
        %1445 = vxpose.xlu0.b32.cont [13/16] %v543, 128
        %1446 = vxpose.xlu0.b32.cont [14/16] %v546, 128
        %1447 = vxpose.xlu0.b32.cont [15/16] %v549, 128
        %1448 = vxpose.xlu0.b32.end [16/16] %v552, 128
        %v1449 = vpop.trf.xlu0
        %v1450 = vpop.trf.xlu0
        %v1451 = vpop.trf.xlu0
        %v1452 = vpop.trf.xlu0
        %v1453 = vpop.trf.xlu0
        %v1454 = vpop.trf.xlu0
        %v1455 = vpop.trf.xlu0
        %v1456 = vpop.trf.xlu0
        %v1457 = vpop.trf.xlu0
        %v1458 = vpop.trf.xlu0
        %v1459 = vpop.trf.xlu0
        %v1460 = vpop.trf.xlu0
        %v1461 = vpop.trf.xlu0
        %v1462 = vpop.trf.xlu0
        %v1463 = vpop.trf.xlu0
        %v1464 = vpop.trf.xlu0
        %1465 = vxpose.xlu0.b32.start [1/16] %v553, 128
        %1466 = vxpose.xlu0.b32.cont [2/16] %v556, 128
        %1467 = vxpose.xlu0.b32.cont [3/16] %v559, 128
        %1468 = vxpose.xlu0.b32.cont [4/16] %v562, 128
        %1469 = vxpose.xlu0.b32.cont [5/16] %v565, 128
        %1470 = vxpose.xlu0.b32.cont [6/16] %v568, 128
        %1471 = vxpose.xlu0.b32.cont [7/16] %v571, 128
        %1472 = vxpose.xlu0.b32.cont [8/16] %v574, 128
        %1473 = vxpose.xlu0.b32.cont [9/16] %v577, 128
        %1474 = vxpose.xlu0.b32.cont [10/16] %v580, 128
        %1475 = vxpose.xlu0.b32.cont [11/16] %v583, 128
        %1476 = vxpose.xlu0.b32.cont [12/16] %v586, 128
        %1477 = vxpose.xlu0.b32.cont [13/16] %v589, 128
        %1478 = vxpose.xlu0.b32.cont [14/16] %v592, 128
        %1479 = vxpose.xlu0.b32.cont [15/16] %v595, 128
        %1480 = vxpose.xlu0.b32.end [16/16] %v598, 128
        %v1481 = vpop.trf.xlu0
        %v1482 = vpop.trf.xlu0
        %v1483 = vpop.trf.xlu0
        %v1484 = vpop.trf.xlu0
        %v1485 = vpop.trf.xlu0
        %v1486 = vpop.trf.xlu0
        %v1487 = vpop.trf.xlu0
        %v1488 = vpop.trf.xlu0
        %v1489 = vpop.trf.xlu0
        %v1490 = vpop.trf.xlu0
        %v1491 = vpop.trf.xlu0
        %v1492 = vpop.trf.xlu0
        %v1493 = vpop.trf.xlu0
        %v1494 = vpop.trf.xlu0
        %v1495 = vpop.trf.xlu0
        %v1496 = vpop.trf.xlu0
        %1497 = vxpose.xlu0.b32.start [1/16] %v554, 128
        %1498 = vxpose.xlu0.b32.cont [2/16] %v557, 128
        %1499 = vxpose.xlu0.b32.cont [3/16] %v560, 128
        %1500 = vxpose.xlu0.b32.cont [4/16] %v563, 128
        %1501 = vxpose.xlu0.b32.cont [5/16] %v566, 128
        %1502 = vxpose.xlu0.b32.cont [6/16] %v569, 128
        %1503 = vxpose.xlu0.b32.cont [7/16] %v572, 128
        %1504 = vxpose.xlu0.b32.cont [8/16] %v575, 128
        %1505 = vxpose.xlu0.b32.cont [9/16] %v578, 128
        %1506 = vxpose.xlu0.b32.cont [10/16] %v581, 128
        %1507 = vxpose.xlu0.b32.cont [11/16] %v584, 128
        %1508 = vxpose.xlu0.b32.cont [12/16] %v587, 128
        %1509 = vxpose.xlu0.b32.cont [13/16] %v590, 128
        %1510 = vxpose.xlu0.b32.cont [14/16] %v593, 128
        %1511 = vxpose.xlu0.b32.cont [15/16] %v596, 128
        %1512 = vxpose.xlu0.b32.end [16/16] %v599, 128
        %v1513 = vpop.trf.xlu0
        %v1514 = vpop.trf.xlu0
        %v1515 = vpop.trf.xlu0
        %v1516 = vpop.trf.xlu0
        %v1517 = vpop.trf.xlu0
        %v1518 = vpop.trf.xlu0
        %v1519 = vpop.trf.xlu0
        %v1520 = vpop.trf.xlu0
        %v1521 = vpop.trf.xlu0
        %v1522 = vpop.trf.xlu0
        %v1523 = vpop.trf.xlu0
        %v1524 = vpop.trf.xlu0
        %v1525 = vpop.trf.xlu0
        %v1526 = vpop.trf.xlu0
        %v1527 = vpop.trf.xlu0
        %v1528 = vpop.trf.xlu0
        %1529 = vxpose.xlu0.b32.start [1/16] %v555, 128
        %1530 = vxpose.xlu0.b32.cont [2/16] %v558, 128
        %1531 = vxpose.xlu0.b32.cont [3/16] %v561, 128
        %1532 = vxpose.xlu0.b32.cont [4/16] %v564, 128
        %1533 = vxpose.xlu0.b32.cont [5/16] %v567, 128
        %1534 = vxpose.xlu0.b32.cont [6/16] %v570, 128
        %1535 = vxpose.xlu0.b32.cont [7/16] %v573, 128
        %1536 = vxpose.xlu0.b32.cont [8/16] %v576, 128
        %1537 = vxpose.xlu0.b32.cont [9/16] %v579, 128
        %1538 = vxpose.xlu0.b32.cont [10/16] %v582, 128
        %1539 = vxpose.xlu0.b32.cont [11/16] %v585, 128
        %1540 = vxpose.xlu0.b32.cont [12/16] %v588, 128
        %1541 = vxpose.xlu0.b32.cont [13/16] %v591, 128
        %1542 = vxpose.xlu0.b32.cont [14/16] %v594, 128
        %1543 = vxpose.xlu0.b32.cont [15/16] %v597, 128
        %1544 = vxpose.xlu0.b32.end [16/16] %v600, 128
        %v1545 = vpop.trf.xlu0
        %v1546 = vpop.trf.xlu0
        %v1547 = vpop.trf.xlu0
        %v1548 = vpop.trf.xlu0
        %v1549 = vpop.trf.xlu0
        %v1550 = vpop.trf.xlu0
        %v1551 = vpop.trf.xlu0
        %v1552 = vpop.trf.xlu0
        %v1553 = vpop.trf.xlu0
        %v1554 = vpop.trf.xlu0
        %v1555 = vpop.trf.xlu0
        %v1556 = vpop.trf.xlu0
        %v1557 = vpop.trf.xlu0
        %v1558 = vpop.trf.xlu0
        %v1559 = vpop.trf.xlu0
        %v1560 = vpop.trf.xlu0
        %1561 = vxpose.xlu0.b32.start [1/16] %v601, 128
        %1562 = vxpose.xlu0.b32.cont [2/16] %v604, 128
        %1563 = vxpose.xlu0.b32.cont [3/16] %v607, 128
        %1564 = vxpose.xlu0.b32.cont [4/16] %v610, 128
        %1565 = vxpose.xlu0.b32.cont [5/16] %v613, 128
        %1566 = vxpose.xlu0.b32.cont [6/16] %v616, 128
        %1567 = vxpose.xlu0.b32.cont [7/16] %v619, 128
        %1568 = vxpose.xlu0.b32.cont [8/16] %v622, 128
        %1569 = vxpose.xlu0.b32.cont [9/16] %v625, 128
        %1570 = vxpose.xlu0.b32.cont [10/16] %v628, 128
        %1571 = vxpose.xlu0.b32.cont [11/16] %v631, 128
        %1572 = vxpose.xlu0.b32.cont [12/16] %v634, 128
        %1573 = vxpose.xlu0.b32.cont [13/16] %v637, 128
        %1574 = vxpose.xlu0.b32.cont [14/16] %v640, 128
        %1575 = vxpose.xlu0.b32.cont [15/16] %v643, 128
        %1576 = vxpose.xlu0.b32.end [16/16] %v646, 128
        %v1577 = vpop.trf.xlu0
        %v1578 = vpop.trf.xlu0
        %v1579 = vpop.trf.xlu0
        %v1580 = vpop.trf.xlu0
        %v1581 = vpop.trf.xlu0
        %v1582 = vpop.trf.xlu0
        %v1583 = vpop.trf.xlu0
        %v1584 = vpop.trf.xlu0
        %v1585 = vpop.trf.xlu0
        %v1586 = vpop.trf.xlu0
        %v1587 = vpop.trf.xlu0
        %v1588 = vpop.trf.xlu0
        %v1589 = vpop.trf.xlu0
        %v1590 = vpop.trf.xlu0
        %v1591 = vpop.trf.xlu0
        %v1592 = vpop.trf.xlu0
        %1593 = vxpose.xlu0.b32.start [1/16] %v602, 128
        %1594 = vxpose.xlu0.b32.cont [2/16] %v605, 128
        %1595 = vxpose.xlu0.b32.cont [3/16] %v608, 128
        %1596 = vxpose.xlu0.b32.cont [4/16] %v611, 128
        %1597 = vxpose.xlu0.b32.cont [5/16] %v614, 128
        %1598 = vxpose.xlu0.b32.cont [6/16] %v617, 128
        %1599 = vxpose.xlu0.b32.cont [7/16] %v620, 128
        %1600 = vxpose.xlu0.b32.cont [8/16] %v623, 128
        %1601 = vxpose.xlu0.b32.cont [9/16] %v626, 128
        %1602 = vxpose.xlu0.b32.cont [10/16] %v629, 128
        %1603 = vxpose.xlu0.b32.cont [11/16] %v632, 128
        %1604 = vxpose.xlu0.b32.cont [12/16] %v635, 128
        %1605 = vxpose.xlu0.b32.cont [13/16] %v638, 128
        %1606 = vxpose.xlu0.b32.cont [14/16] %v641, 128
        %1607 = vxpose.xlu0.b32.cont [15/16] %v644, 128
        %1608 = vxpose.xlu0.b32.end [16/16] %v647, 128
        %v1609 = vpop.trf.xlu0
        %v1610 = vpop.trf.xlu0
        %v1611 = vpop.trf.xlu0
        %v1612 = vpop.trf.xlu0
        %v1613 = vpop.trf.xlu0
        %v1614 = vpop.trf.xlu0
        %v1615 = vpop.trf.xlu0
        %v1616 = vpop.trf.xlu0
        %v1617 = vpop.trf.xlu0
        %v1618 = vpop.trf.xlu0
        %v1619 = vpop.trf.xlu0
        %v1620 = vpop.trf.xlu0
        %v1621 = vpop.trf.xlu0
        %v1622 = vpop.trf.xlu0
        %v1623 = vpop.trf.xlu0
        %v1624 = vpop.trf.xlu0
        %1625 = vxpose.xlu0.b32.start [1/16] %v603, 128
        %1626 = vxpose.xlu0.b32.cont [2/16] %v606, 128
        %1627 = vxpose.xlu0.b32.cont [3/16] %v609, 128
        %1628 = vxpose.xlu0.b32.cont [4/16] %v612, 128
        %1629 = vxpose.xlu0.b32.cont [5/16] %v615, 128
        %1630 = vxpose.xlu0.b32.cont [6/16] %v618, 128
        %1631 = vxpose.xlu0.b32.cont [7/16] %v621, 128
        %1632 = vxpose.xlu0.b32.cont [8/16] %v624, 128
        %1633 = vxpose.xlu0.b32.cont [9/16] %v627, 128
        %1634 = vxpose.xlu0.b32.cont [10/16] %v630, 128
        %1635 = vxpose.xlu0.b32.cont [11/16] %v633, 128
        %1636 = vxpose.xlu0.b32.cont [12/16] %v636, 128
        %1637 = vxpose.xlu0.b32.cont [13/16] %v639, 128
        %1638 = vxpose.xlu0.b32.cont [14/16] %v642, 128
        %1639 = vxpose.xlu0.b32.cont [15/16] %v645, 128
        %1640 = vxpose.xlu0.b32.end [16/16] %v648, 128
        %v1641 = vpop.trf.xlu0
        %v1642 = vpop.trf.xlu0
        %v1643 = vpop.trf.xlu0
        %v1644 = vpop.trf.xlu0
        %v1645 = vpop.trf.xlu0
        %v1646 = vpop.trf.xlu0
        %v1647 = vpop.trf.xlu0
        %v1648 = vpop.trf.xlu0
        %v1649 = vpop.trf.xlu0
        %v1650 = vpop.trf.xlu0
        %v1651 = vpop.trf.xlu0
        %v1652 = vpop.trf.xlu0
        %v1653 = vpop.trf.xlu0
        %v1654 = vpop.trf.xlu0
        %v1655 = vpop.trf.xlu0
        %v1656 = vpop.trf.xlu0
        %1657 = vxpose.xlu0.b32.start [1/16] %v649, 128
        %1658 = vxpose.xlu0.b32.cont [2/16] %v652, 128
        %1659 = vxpose.xlu0.b32.cont [3/16] %v655, 128
        %1660 = vxpose.xlu0.b32.cont [4/16] %v658, 128
        %1661 = vxpose.xlu0.b32.cont [5/16] %v661, 128
        %1662 = vxpose.xlu0.b32.cont [6/16] %v664, 128
        %1663 = vxpose.xlu0.b32.cont [7/16] %v667, 128
        %1664 = vxpose.xlu0.b32.cont [8/16] %v670, 128
        %1665 = vxpose.xlu0.b32.cont [9/16] %v673, 128
        %1666 = vxpose.xlu0.b32.cont [10/16] %v676, 128
        %1667 = vxpose.xlu0.b32.cont [11/16] %v679, 128
        %1668 = vxpose.xlu0.b32.cont [12/16] %v682, 128
        %1669 = vxpose.xlu0.b32.cont [13/16] %v685, 128
        %1670 = vxpose.xlu0.b32.cont [14/16] %v688, 128
        %1671 = vxpose.xlu0.b32.cont [15/16] %v691, 128
        %1672 = vxpose.xlu0.b32.end [16/16] %v694, 128
        %v1673 = vpop.trf.xlu0
        %v1674 = vpop.trf.xlu0
        %v1675 = vpop.trf.xlu0
        %v1676 = vpop.trf.xlu0
        %v1677 = vpop.trf.xlu0
        %v1678 = vpop.trf.xlu0
        %v1679 = vpop.trf.xlu0
        %v1680 = vpop.trf.xlu0
        %v1681 = vpop.trf.xlu0
        %v1682 = vpop.trf.xlu0
        %v1683 = vpop.trf.xlu0
        %v1684 = vpop.trf.xlu0
        %v1685 = vpop.trf.xlu0
        %v1686 = vpop.trf.xlu0
        %v1687 = vpop.trf.xlu0
        %v1688 = vpop.trf.xlu0
        %1689 = vxpose.xlu0.b32.start [1/16] %v650, 128
        %1690 = vxpose.xlu0.b32.cont [2/16] %v653, 128
        %1691 = vxpose.xlu0.b32.cont [3/16] %v656, 128
        %1692 = vxpose.xlu0.b32.cont [4/16] %v659, 128
        %1693 = vxpose.xlu0.b32.cont [5/16] %v662, 128
        %1694 = vxpose.xlu0.b32.cont [6/16] %v665, 128
        %1695 = vxpose.xlu0.b32.cont [7/16] %v668, 128
        %1696 = vxpose.xlu0.b32.cont [8/16] %v671, 128
        %1697 = vxpose.xlu0.b32.cont [9/16] %v674, 128
        %1698 = vxpose.xlu0.b32.cont [10/16] %v677, 128
        %1699 = vxpose.xlu0.b32.cont [11/16] %v680, 128
        %1700 = vxpose.xlu0.b32.cont [12/16] %v683, 128
        %1701 = vxpose.xlu0.b32.cont [13/16] %v686, 128
        %1702 = vxpose.xlu0.b32.cont [14/16] %v689, 128
        %1703 = vxpose.xlu0.b32.cont [15/16] %v692, 128
        %1704 = vxpose.xlu0.b32.end [16/16] %v695, 128
        %v1705 = vpop.trf.xlu0
        %v1706 = vpop.trf.xlu0
        %v1707 = vpop.trf.xlu0
        %v1708 = vpop.trf.xlu0
        %v1709 = vpop.trf.xlu0
        %v1710 = vpop.trf.xlu0
        %v1711 = vpop.trf.xlu0
        %v1712 = vpop.trf.xlu0
        %v1713 = vpop.trf.xlu0
        %v1714 = vpop.trf.xlu0
        %v1715 = vpop.trf.xlu0
        %v1716 = vpop.trf.xlu0
        %v1717 = vpop.trf.xlu0
        %v1718 = vpop.trf.xlu0
        %v1719 = vpop.trf.xlu0
        %v1720 = vpop.trf.xlu0
        %1721 = vxpose.xlu0.b32.start [1/16] %v651, 128
        %1722 = vxpose.xlu0.b32.cont [2/16] %v654, 128
        %1723 = vxpose.xlu0.b32.cont [3/16] %v657, 128
        %1724 = vxpose.xlu0.b32.cont [4/16] %v660, 128
        %1725 = vxpose.xlu0.b32.cont [5/16] %v663, 128
        %1726 = vxpose.xlu0.b32.cont [6/16] %v666, 128
        %1727 = vxpose.xlu0.b32.cont [7/16] %v669, 128
        %1728 = vxpose.xlu0.b32.cont [8/16] %v672, 128
        %1729 = vxpose.xlu0.b32.cont [9/16] %v675, 128
        %1730 = vxpose.xlu0.b32.cont [10/16] %v678, 128
        %1731 = vxpose.xlu0.b32.cont [11/16] %v681, 128
        %1732 = vxpose.xlu0.b32.cont [12/16] %v684, 128
        %1733 = vxpose.xlu0.b32.cont [13/16] %v687, 128
        %1734 = vxpose.xlu0.b32.cont [14/16] %v690, 128
        %1735 = vxpose.xlu0.b32.cont [15/16] %v693, 128
        %1736 = vxpose.xlu0.b32.end [16/16] %v696, 128
        %v1737 = vpop.trf.xlu0
        %v1738 = vpop.trf.xlu0
        %v1739 = vpop.trf.xlu0
        %v1740 = vpop.trf.xlu0
        %v1741 = vpop.trf.xlu0
        %v1742 = vpop.trf.xlu0
        %v1743 = vpop.trf.xlu0
        %v1744 = vpop.trf.xlu0
        %v1745 = vpop.trf.xlu0
        %v1746 = vpop.trf.xlu0
        %v1747 = vpop.trf.xlu0
        %v1748 = vpop.trf.xlu0
        %v1749 = vpop.trf.xlu0
        %v1750 = vpop.trf.xlu0
        %v1751 = vpop.trf.xlu0
        %v1752 = vpop.trf.xlu0
        %1753 = vxpose.xlu0.b32.start [1/16] %v697, 128
        %1754 = vxpose.xlu0.b32.cont [2/16] %v700, 128
        %1755 = vxpose.xlu0.b32.cont [3/16] %v703, 128
        %1756 = vxpose.xlu0.b32.cont [4/16] %v706, 128
        %1757 = vxpose.xlu0.b32.cont [5/16] %v709, 128
        %1758 = vxpose.xlu0.b32.cont [6/16] %v712, 128
        %1759 = vxpose.xlu0.b32.cont [7/16] %v715, 128
        %1760 = vxpose.xlu0.b32.cont [8/16] %v718, 128
        %1761 = vxpose.xlu0.b32.cont [9/16] %v721, 128
        %1762 = vxpose.xlu0.b32.cont [10/16] %v724, 128
        %1763 = vxpose.xlu0.b32.cont [11/16] %v727, 128
        %1764 = vxpose.xlu0.b32.cont [12/16] %v730, 128
        %1765 = vxpose.xlu0.b32.cont [13/16] %v733, 128
        %1766 = vxpose.xlu0.b32.cont [14/16] %v736, 128
        %1767 = vxpose.xlu0.b32.cont [15/16] %v739, 128
        %1768 = vxpose.xlu0.b32.end [16/16] %v742, 128
        %v1769 = vpop.trf.xlu0
        %v1770 = vpop.trf.xlu0
        %v1771 = vpop.trf.xlu0
        %v1772 = vpop.trf.xlu0
        %v1773 = vpop.trf.xlu0
        %v1774 = vpop.trf.xlu0
        %v1775 = vpop.trf.xlu0
        %v1776 = vpop.trf.xlu0
        %v1777 = vpop.trf.xlu0
        %v1778 = vpop.trf.xlu0
        %v1779 = vpop.trf.xlu0
        %v1780 = vpop.trf.xlu0
        %v1781 = vpop.trf.xlu0
        %v1782 = vpop.trf.xlu0
        %v1783 = vpop.trf.xlu0
        %v1784 = vpop.trf.xlu0
        %1785 = vxpose.xlu0.b32.start [1/16] %v698, 128
        %1786 = vxpose.xlu0.b32.cont [2/16] %v701, 128
        %1787 = vxpose.xlu0.b32.cont [3/16] %v704, 128
        %1788 = vxpose.xlu0.b32.cont [4/16] %v707, 128
        %1789 = vxpose.xlu0.b32.cont [5/16] %v710, 128
        %1790 = vxpose.xlu0.b32.cont [6/16] %v713, 128
        %1791 = vxpose.xlu0.b32.cont [7/16] %v716, 128
        %1792 = vxpose.xlu0.b32.cont [8/16] %v719, 128
        %1793 = vxpose.xlu0.b32.cont [9/16] %v722, 128
        %1794 = vxpose.xlu0.b32.cont [10/16] %v725, 128
        %1795 = vxpose.xlu0.b32.cont [11/16] %v728, 128
        %1796 = vxpose.xlu0.b32.cont [12/16] %v731, 128
        %1797 = vxpose.xlu0.b32.cont [13/16] %v734, 128
        %1798 = vxpose.xlu0.b32.cont [14/16] %v737, 128
        %1799 = vxpose.xlu0.b32.cont [15/16] %v740, 128
        %1800 = vxpose.xlu0.b32.end [16/16] %v743, 128
        %v1801 = vpop.trf.xlu0
        %v1802 = vpop.trf.xlu0
        %v1803 = vpop.trf.xlu0
        %v1804 = vpop.trf.xlu0
        %v1805 = vpop.trf.xlu0
        %v1806 = vpop.trf.xlu0
        %v1807 = vpop.trf.xlu0
        %v1808 = vpop.trf.xlu0
        %v1809 = vpop.trf.xlu0
        %v1810 = vpop.trf.xlu0
        %v1811 = vpop.trf.xlu0
        %v1812 = vpop.trf.xlu0
        %v1813 = vpop.trf.xlu0
        %v1814 = vpop.trf.xlu0
        %v1815 = vpop.trf.xlu0
        %v1816 = vpop.trf.xlu0
        %1817 = vxpose.xlu0.b32.start [1/16] %v699, 128
        %1818 = vxpose.xlu0.b32.cont [2/16] %v702, 128
        %1819 = vxpose.xlu0.b32.cont [3/16] %v705, 128
        %1820 = vxpose.xlu0.b32.cont [4/16] %v708, 128
        %1821 = vxpose.xlu0.b32.cont [5/16] %v711, 128
        %1822 = vxpose.xlu0.b32.cont [6/16] %v714, 128
        %1823 = vxpose.xlu0.b32.cont [7/16] %v717, 128
        %1824 = vxpose.xlu0.b32.cont [8/16] %v720, 128
        %1825 = vxpose.xlu0.b32.cont [9/16] %v723, 128
        %1826 = vxpose.xlu0.b32.cont [10/16] %v726, 128
        %1827 = vxpose.xlu0.b32.cont [11/16] %v729, 128
        %1828 = vxpose.xlu0.b32.cont [12/16] %v732, 128
        %1829 = vxpose.xlu0.b32.cont [13/16] %v735, 128
        %1830 = vxpose.xlu0.b32.cont [14/16] %v738, 128
        %1831 = vxpose.xlu0.b32.cont [15/16] %v741, 128
        %1832 = vxpose.xlu0.b32.end [16/16] %v744, 128
        %v1833 = vpop.trf.xlu0
        %v1834 = vpop.trf.xlu0
        %v1835 = vpop.trf.xlu0
        %v1836 = vpop.trf.xlu0
        %v1837 = vpop.trf.xlu0
        %v1838 = vpop.trf.xlu0
        %v1839 = vpop.trf.xlu0
        %v1840 = vpop.trf.xlu0
        %v1841 = vpop.trf.xlu0
        %v1842 = vpop.trf.xlu0
        %v1843 = vpop.trf.xlu0
        %v1844 = vpop.trf.xlu0
        %v1845 = vpop.trf.xlu0
        %v1846 = vpop.trf.xlu0
        %v1847 = vpop.trf.xlu0
        %v1848 = vpop.trf.xlu0
        %1849 = vxpose.xlu0.b32.start [1/16] %v745, 128
        %1850 = vxpose.xlu0.b32.cont [2/16] %v748, 128
        %1851 = vxpose.xlu0.b32.cont [3/16] %v751, 128
        %1852 = vxpose.xlu0.b32.cont [4/16] %v754, 128
        %1853 = vxpose.xlu0.b32.cont [5/16] %v757, 128
        %1854 = vxpose.xlu0.b32.cont [6/16] %v760, 128
        %1855 = vxpose.xlu0.b32.cont [7/16] %v763, 128
        %1856 = vxpose.xlu0.b32.cont [8/16] %v766, 128
        %1857 = vxpose.xlu0.b32.cont [9/16] %v769, 128
        %1858 = vxpose.xlu0.b32.cont [10/16] %v772, 128
        %1859 = vxpose.xlu0.b32.cont [11/16] %v775, 128
        %1860 = vxpose.xlu0.b32.cont [12/16] %v778, 128
        %1861 = vxpose.xlu0.b32.cont [13/16] %v781, 128
        %1862 = vxpose.xlu0.b32.cont [14/16] %v784, 128
        %1863 = vxpose.xlu0.b32.cont [15/16] %v787, 128
        %1864 = vxpose.xlu0.b32.end [16/16] %v790, 128
        %v1865 = vpop.trf.xlu0
        %v1866 = vpop.trf.xlu0
        %v1867 = vpop.trf.xlu0
        %v1868 = vpop.trf.xlu0
        %v1869 = vpop.trf.xlu0
        %v1870 = vpop.trf.xlu0
        %v1871 = vpop.trf.xlu0
        %v1872 = vpop.trf.xlu0
        %v1873 = vpop.trf.xlu0
        %v1874 = vpop.trf.xlu0
        %v1875 = vpop.trf.xlu0
        %v1876 = vpop.trf.xlu0
        %v1877 = vpop.trf.xlu0
        %v1878 = vpop.trf.xlu0
        %v1879 = vpop.trf.xlu0
        %v1880 = vpop.trf.xlu0
        %1881 = vxpose.xlu0.b32.start [1/16] %v746, 128
        %1882 = vxpose.xlu0.b32.cont [2/16] %v749, 128
        %1883 = vxpose.xlu0.b32.cont [3/16] %v752, 128
        %1884 = vxpose.xlu0.b32.cont [4/16] %v755, 128
        %1885 = vxpose.xlu0.b32.cont [5/16] %v758, 128
        %1886 = vxpose.xlu0.b32.cont [6/16] %v761, 128
        %1887 = vxpose.xlu0.b32.cont [7/16] %v764, 128
        %1888 = vxpose.xlu0.b32.cont [8/16] %v767, 128
        %1889 = vxpose.xlu0.b32.cont [9/16] %v770, 128
        %1890 = vxpose.xlu0.b32.cont [10/16] %v773, 128
        %1891 = vxpose.xlu0.b32.cont [11/16] %v776, 128
        %1892 = vxpose.xlu0.b32.cont [12/16] %v779, 128
        %1893 = vxpose.xlu0.b32.cont [13/16] %v782, 128
        %1894 = vxpose.xlu0.b32.cont [14/16] %v785, 128
        %1895 = vxpose.xlu0.b32.cont [15/16] %v788, 128
        %1896 = vxpose.xlu0.b32.end [16/16] %v791, 128
        %v1897 = vpop.trf.xlu0
        %v1898 = vpop.trf.xlu0
        %v1899 = vpop.trf.xlu0
        %v1900 = vpop.trf.xlu0
        %v1901 = vpop.trf.xlu0
        %v1902 = vpop.trf.xlu0
        %v1903 = vpop.trf.xlu0
        %v1904 = vpop.trf.xlu0
        %v1905 = vpop.trf.xlu0
        %v1906 = vpop.trf.xlu0
        %v1907 = vpop.trf.xlu0
        %v1908 = vpop.trf.xlu0
        %v1909 = vpop.trf.xlu0
        %v1910 = vpop.trf.xlu0
        %v1911 = vpop.trf.xlu0
        %v1912 = vpop.trf.xlu0
        %1913 = vxpose.xlu0.b32.start [1/16] %v747, 128
        %1914 = vxpose.xlu0.b32.cont [2/16] %v750, 128
        %1915 = vxpose.xlu0.b32.cont [3/16] %v753, 128
        %1916 = vxpose.xlu0.b32.cont [4/16] %v756, 128
        %1917 = vxpose.xlu0.b32.cont [5/16] %v759, 128
        %1918 = vxpose.xlu0.b32.cont [6/16] %v762, 128
        %1919 = vxpose.xlu0.b32.cont [7/16] %v765, 128
        %1920 = vxpose.xlu0.b32.cont [8/16] %v768, 128
        %1921 = vxpose.xlu0.b32.cont [9/16] %v771, 128
        %1922 = vxpose.xlu0.b32.cont [10/16] %v774, 128
        %1923 = vxpose.xlu0.b32.cont [11/16] %v777, 128
        %1924 = vxpose.xlu0.b32.cont [12/16] %v780, 128
        %1925 = vxpose.xlu0.b32.cont [13/16] %v783, 128
        %1926 = vxpose.xlu0.b32.cont [14/16] %v786, 128
        %1927 = vxpose.xlu0.b32.cont [15/16] %v789, 128
        %1928 = vxpose.xlu0.b32.end [16/16] %v792, 128
        %v1929 = vpop.trf.xlu0
        %v1930 = vpop.trf.xlu0
        %v1931 = vpop.trf.xlu0
        %v1932 = vpop.trf.xlu0
        %v1933 = vpop.trf.xlu0
        %v1934 = vpop.trf.xlu0
        %v1935 = vpop.trf.xlu0
        %v1936 = vpop.trf.xlu0
        %v1937 = vpop.trf.xlu0
        %v1938 = vpop.trf.xlu0
        %v1939 = vpop.trf.xlu0
        %v1940 = vpop.trf.xlu0
        %v1941 = vpop.trf.xlu0
        %v1942 = vpop.trf.xlu0
        %v1943 = vpop.trf.xlu0
        %v1944 = vpop.trf.xlu0
        %1945 = vst [vmem:[%s177] sm:$0xff] %v809
        %1946 = vst [vmem:[%s177 + $0x8] sm:$0xff] %v905
        %1947 = vst [vmem:[%s177 + $0x10] sm:$0xff] %v810
        %1948 = vst [vmem:[%s177 + $0x18] sm:$0xff] %v906
        %1949 = vst [vmem:[%s177 + $0x20] sm:$0xff] %v811
        %1950 = vst [vmem:[%s177 + $0x28] sm:$0xff] %v907
        %1951 = vst [vmem:[%s177 + $0x30] sm:$0xff] %v812
        %1952 = vst [vmem:[%s177 + $0x38] sm:$0xff] %v908
        %1953 = vst [vmem:[%s177 + $0x40] sm:$0xff] %v813
        %1954 = vst [vmem:[%s177 + $0x48] sm:$0xff] %v909
        %1955 = vst [vmem:[%s177 + $0x50] sm:$0xff] %v814
        %1956 = vst [vmem:[%s177 + $0x58] sm:$0xff] %v910
        %1957 = vst [vmem:[%s177 + $0x60] sm:$0xff] %v815
        %1958 = vst [vmem:[%s177 + $0x68] sm:$0xff] %v911
        %1959 = vst [vmem:[%s177 + $0x70] sm:$0xff] %v816
        %1960 = vst [vmem:[%s177 + $0x78] sm:$0xff] %v912
        %1961 = vst [vmem:[%s177 + $0x80] sm:$0xff] %v817
        %1962 = vst [vmem:[%s177 + $0x88] sm:$0xff] %v913
        %1963 = vst [vmem:[%s177 + $0x90] sm:$0xff] %v818
        %1964 = vst [vmem:[%s177 + $0x98] sm:$0xff] %v914
        %1965 = vst [vmem:[%s177 + $0xa0] sm:$0xff] %v819
        %1966 = vst [vmem:[%s177 + $0xa8] sm:$0xff] %v915
        %1967 = vst [vmem:[%s177 + $0xb0] sm:$0xff] %v820
        %1968 = vst [vmem:[%s177 + $0xb8] sm:$0xff] %v916
        %1969 = vst [vmem:[%s177 + $0xc0] sm:$0xff] %v821
        %1970 = vst [vmem:[%s177 + $0xc8] sm:$0xff] %v917
        %1971 = vst [vmem:[%s177 + $0xd0] sm:$0xff] %v822
        %1972 = vst [vmem:[%s177 + $0xd8] sm:$0xff] %v918
        %1973 = vst [vmem:[%s177 + $0xe0] sm:$0xff] %v823
        %1974 = vst [vmem:[%s177 + $0xe8] sm:$0xff] %v919
        %1975 = vst [vmem:[%s177 + $0xf0] sm:$0xff] %v824
        %1976 = vst [vmem:[%s177 + $0xf8] sm:$0xff] %v920
        %1977 = vst [vmem:[%s177 + $0x100] sm:$0xff] %v841
        %1978 = vst [vmem:[%s177 + $0x108] sm:$0xff] %v937
        %1979 = vst [vmem:[%s177 + $0x110] sm:$0xff] %v842
        %1980 = vst [vmem:[%s177 + $0x118] sm:$0xff] %v938
        %1981 = vst [vmem:[%s177 + $0x120] sm:$0xff] %v843
        %1982 = vst [vmem:[%s177 + $0x128] sm:$0xff] %v939
        %1983 = vst [vmem:[%s177 + $0x130] sm:$0xff] %v844
        %1984 = vst [vmem:[%s177 + $0x138] sm:$0xff] %v940
        %1985 = vst [vmem:[%s177 + $0x140] sm:$0xff] %v845
        %1986 = vst [vmem:[%s177 + $0x148] sm:$0xff] %v941
        %1987 = vst [vmem:[%s177 + $0x150] sm:$0xff] %v846
        %1988 = vst [vmem:[%s177 + $0x158] sm:$0xff] %v942
        %1989 = vst [vmem:[%s177 + $0x160] sm:$0xff] %v847
        %1990 = vst [vmem:[%s177 + $0x168] sm:$0xff] %v943
        %1991 = vst [vmem:[%s177 + $0x170] sm:$0xff] %v848
        %1992 = vst [vmem:[%s177 + $0x178] sm:$0xff] %v944
        %1993 = vst [vmem:[%s177 + $0x180] sm:$0xff] %v849
        %1994 = vst [vmem:[%s177 + $0x188] sm:$0xff] %v945
        %1995 = vst [vmem:[%s177 + $0x190] sm:$0xff] %v850
        %1996 = vst [vmem:[%s177 + $0x198] sm:$0xff] %v946
        %1997 = vst [vmem:[%s177 + $0x1a0] sm:$0xff] %v851
        %1998 = vst [vmem:[%s177 + $0x1a8] sm:$0xff] %v947
        %1999 = vst [vmem:[%s177 + $0x1b0] sm:$0xff] %v852
        %2000 = vst [vmem:[%s177 + $0x1b8] sm:$0xff] %v948
        %2001 = vst [vmem:[%s177 + $0x1c0] sm:$0xff] %v853
        %2002 = vst [vmem:[%s177 + $0x1c8] sm:$0xff] %v949
        %2003 = vst [vmem:[%s177 + $0x1d0] sm:$0xff] %v854
        %2004 = vst [vmem:[%s177 + $0x1d8] sm:$0xff] %v950
        %2005 = vst [vmem:[%s177 + $0x1e0] sm:$0xff] %v855
        %2006 = vst [vmem:[%s177 + $0x1e8] sm:$0xff] %v951
        %2007 = vst [vmem:[%s177 + $0x1f0] sm:$0xff] %v856
        %2008 = vst [vmem:[%s177 + $0x1f8] sm:$0xff] %v952
        %2009 = vst [vmem:[%s177 + $0x200] sm:$0xff] %v873
        %2010 = vst [vmem:[%s177 + $0x208] sm:$0xff] %v969
        %2011 = vst [vmem:[%s177 + $0x210] sm:$0xff] %v874
        %2012 = vst [vmem:[%s177 + $0x218] sm:$0xff] %v970
        %2013 = vst [vmem:[%s177 + $0x220] sm:$0xff] %v875
        %2014 = vst [vmem:[%s177 + $0x228] sm:$0xff] %v971
        %2015 = vst [vmem:[%s177 + $0x230] sm:$0xff] %v876
        %2016 = vst [vmem:[%s177 + $0x238] sm:$0xff] %v972
        %2017 = vst [vmem:[%s177 + $0x240] sm:$0xff] %v877
        %2018 = vst [vmem:[%s177 + $0x248] sm:$0xff] %v973
        %2019 = vst [vmem:[%s177 + $0x250] sm:$0xff] %v878
        %2020 = vst [vmem:[%s177 + $0x258] sm:$0xff] %v974
        %2021 = vst [vmem:[%s177 + $0x260] sm:$0xff] %v879
        %2022 = vst [vmem:[%s177 + $0x268] sm:$0xff] %v975
        %2023 = vst [vmem:[%s177 + $0x270] sm:$0xff] %v880
        %2024 = vst [vmem:[%s177 + $0x278] sm:$0xff] %v976
        %2025 = vst [vmem:[%s177 + $0x280] sm:$0xff] %v1001
        %2026 = vst [vmem:[%s177 + $0x288] sm:$0xff] %v1097
        %2027 = vst [vmem:[%s177 + $0x290] sm:$0xff] %v1002
        %2028 = vst [vmem:[%s177 + $0x298] sm:$0xff] %v1098
        %2029 = vst [vmem:[%s177 + $0x2a0] sm:$0xff] %v1003
        %2030 = vst [vmem:[%s177 + $0x2a8] sm:$0xff] %v1099
        %2031 = vst [vmem:[%s177 + $0x2b0] sm:$0xff] %v1004
        %2032 = vst [vmem:[%s177 + $0x2b8] sm:$0xff] %v1100
        %2033 = vst [vmem:[%s177 + $0x2c0] sm:$0xff] %v1005
        %2034 = vst [vmem:[%s177 + $0x2c8] sm:$0xff] %v1101
        %2035 = vst [vmem:[%s177 + $0x2d0] sm:$0xff] %v1006
        %2036 = vst [vmem:[%s177 + $0x2d8] sm:$0xff] %v1102
        %2037 = vst [vmem:[%s177 + $0x2e0] sm:$0xff] %v1007
        %2038 = vst [vmem:[%s177 + $0x2e8] sm:$0xff] %v1103
        %2039 = vst [vmem:[%s177 + $0x2f0] sm:$0xff] %v1008
        %2040 = vst [vmem:[%s177 + $0x2f8] sm:$0xff] %v1104
        %2041 = vst [vmem:[%s177 + $0x300] sm:$0xff] %v1009
        %2042 = vst [vmem:[%s177 + $0x308] sm:$0xff] %v1105
        %2043 = vst [vmem:[%s177 + $0x310] sm:$0xff] %v1010
        %2044 = vst [vmem:[%s177 + $0x318] sm:$0xff] %v1106
        %2045 = vst [vmem:[%s177 + $0x320] sm:$0xff] %v1011
        %2046 = vst [vmem:[%s177 + $0x328] sm:$0xff] %v1107
        %2047 = vst [vmem:[%s177 + $0x330] sm:$0xff] %v1012
        %2048 = vst [vmem:[%s177 + $0x338] sm:$0xff] %v1108
        %2049 = vst [vmem:[%s177 + $0x340] sm:$0xff] %v1013
        %2050 = vst [vmem:[%s177 + $0x348] sm:$0xff] %v1109
        %2051 = vst [vmem:[%s177 + $0x350] sm:$0xff] %v1014
        %2052 = vst [vmem:[%s177 + $0x358] sm:$0xff] %v1110
        %2053 = vst [vmem:[%s177 + $0x360] sm:$0xff] %v1015
        %2054 = vst [vmem:[%s177 + $0x368] sm:$0xff] %v1111
        %2055 = vst [vmem:[%s177 + $0x370] sm:$0xff] %v1016
        %2056 = vst [vmem:[%s177 + $0x378] sm:$0xff] %v1112
        %2057 = vst [vmem:[%s177 + $0x380] sm:$0xff] %v1033
        %2058 = vst [vmem:[%s177 + $0x388] sm:$0xff] %v1129
        %2059 = vst [vmem:[%s177 + $0x390] sm:$0xff] %v1034
        %2060 = vst [vmem:[%s177 + $0x398] sm:$0xff] %v1130
        %2061 = vst [vmem:[%s177 + $0x3a0] sm:$0xff] %v1035
        %2062 = vst [vmem:[%s177 + $0x3a8] sm:$0xff] %v1131
        %2063 = vst [vmem:[%s177 + $0x3b0] sm:$0xff] %v1036
        %2064 = vst [vmem:[%s177 + $0x3b8] sm:$0xff] %v1132
        %2065 = vst [vmem:[%s177 + $0x3c0] sm:$0xff] %v1037
        %2066 = vst [vmem:[%s177 + $0x3c8] sm:$0xff] %v1133
        %2067 = vst [vmem:[%s177 + $0x3d0] sm:$0xff] %v1038
        %2068 = vst [vmem:[%s177 + $0x3d8] sm:$0xff] %v1134
        %2069 = vst [vmem:[%s177 + $0x3e0] sm:$0xff] %v1039
        %2070 = vst [vmem:[%s177 + $0x3e8] sm:$0xff] %v1135
        %2071 = vst [vmem:[%s177 + $0x3f0] sm:$0xff] %v1040
        %2072 = vst [vmem:[%s177 + $0x3f8] sm:$0xff] %v1136
        %2073 = vst [vmem:[%s177 + $0x400] sm:$0xff] %v1041
        %2074 = vst [vmem:[%s177 + $0x408] sm:$0xff] %v1137
        %2075 = vst [vmem:[%s177 + $0x410] sm:$0xff] %v1042
        %2076 = vst [vmem:[%s177 + $0x418] sm:$0xff] %v1138
        %2077 = vst [vmem:[%s177 + $0x420] sm:$0xff] %v1043
        %2078 = vst [vmem:[%s177 + $0x428] sm:$0xff] %v1139
        %2079 = vst [vmem:[%s177 + $0x430] sm:$0xff] %v1044
        %2080 = vst [vmem:[%s177 + $0x438] sm:$0xff] %v1140
        %2081 = vst [vmem:[%s177 + $0x440] sm:$0xff] %v1045
        %2082 = vst [vmem:[%s177 + $0x448] sm:$0xff] %v1141
        %2083 = vst [vmem:[%s177 + $0x450] sm:$0xff] %v1046
        %2084 = vst [vmem:[%s177 + $0x458] sm:$0xff] %v1142
        %2085 = vst [vmem:[%s177 + $0x460] sm:$0xff] %v1047
        %2086 = vst [vmem:[%s177 + $0x468] sm:$0xff] %v1143
        %2087 = vst [vmem:[%s177 + $0x470] sm:$0xff] %v1048
        %2088 = vst [vmem:[%s177 + $0x478] sm:$0xff] %v1144
        %2089 = vst [vmem:[%s177 + $0x480] sm:$0xff] %v1065
        %2090 = vst [vmem:[%s177 + $0x488] sm:$0xff] %v1161
        %2091 = vst [vmem:[%s177 + $0x490] sm:$0xff] %v1066
        %2092 = vst [vmem:[%s177 + $0x498] sm:$0xff] %v1162
        %2093 = vst [vmem:[%s177 + $0x4a0] sm:$0xff] %v1067
        %2094 = vst [vmem:[%s177 + $0x4a8] sm:$0xff] %v1163
        %2095 = vst [vmem:[%s177 + $0x4b0] sm:$0xff] %v1068
        %2096 = vst [vmem:[%s177 + $0x4b8] sm:$0xff] %v1164
        %2097 = vst [vmem:[%s177 + $0x4c0] sm:$0xff] %v1069
        %2098 = vst [vmem:[%s177 + $0x4c8] sm:$0xff] %v1165
        %2099 = vst [vmem:[%s177 + $0x4d0] sm:$0xff] %v1070
        %2100 = vst [vmem:[%s177 + $0x4d8] sm:$0xff] %v1166
        %2101 = vst [vmem:[%s177 + $0x4e0] sm:$0xff] %v1071
        %2102 = vst [vmem:[%s177 + $0x4e8] sm:$0xff] %v1167
        %2103 = vst [vmem:[%s177 + $0x4f0] sm:$0xff] %v1072
        %2104 = vst [vmem:[%s177 + $0x4f8] sm:$0xff] %v1168
        %2105 = vst [vmem:[%s177 + $0x500] sm:$0xff] %v1193
        %2106 = vst [vmem:[%s177 + $0x508] sm:$0xff] %v1289
        %2107 = vst [vmem:[%s177 + $0x510] sm:$0xff] %v1194
        %2108 = vst [vmem:[%s177 + $0x518] sm:$0xff] %v1290
        %2109 = vst [vmem:[%s177 + $0x520] sm:$0xff] %v1195
        %2110 = vst [vmem:[%s177 + $0x528] sm:$0xff] %v1291
        %2111 = vst [vmem:[%s177 + $0x530] sm:$0xff] %v1196
        %2112 = vst [vmem:[%s177 + $0x538] sm:$0xff] %v1292
        %2113 = vst [vmem:[%s177 + $0x540] sm:$0xff] %v1197
        %2114 = vst [vmem:[%s177 + $0x548] sm:$0xff] %v1293
        %2115 = vst [vmem:[%s177 + $0x550] sm:$0xff] %v1198
        %2116 = vst [vmem:[%s177 + $0x558] sm:$0xff] %v1294
        %2117 = vst [vmem:[%s177 + $0x560] sm:$0xff] %v1199
        %2118 = vst [vmem:[%s177 + $0x568] sm:$0xff] %v1295
        %2119 = vst [vmem:[%s177 + $0x570] sm:$0xff] %v1200
        %2120 = vst [vmem:[%s177 + $0x578] sm:$0xff] %v1296
        %2121 = vst [vmem:[%s177 + $0x580] sm:$0xff] %v1201
        %2122 = vst [vmem:[%s177 + $0x588] sm:$0xff] %v1297
        %2123 = vst [vmem:[%s177 + $0x590] sm:$0xff] %v1202
        %2124 = vst [vmem:[%s177 + $0x598] sm:$0xff] %v1298
        %2125 = vst [vmem:[%s177 + $0x5a0] sm:$0xff] %v1203
        %2126 = vst [vmem:[%s177 + $0x5a8] sm:$0xff] %v1299
        %2127 = vst [vmem:[%s177 + $0x5b0] sm:$0xff] %v1204
        %2128 = vst [vmem:[%s177 + $0x5b8] sm:$0xff] %v1300
        %2129 = vst [vmem:[%s177 + $0x5c0] sm:$0xff] %v1205
        %2130 = vst [vmem:[%s177 + $0x5c8] sm:$0xff] %v1301
        %2131 = vst [vmem:[%s177 + $0x5d0] sm:$0xff] %v1206
        %2132 = vst [vmem:[%s177 + $0x5d8] sm:$0xff] %v1302
        %2133 = vst [vmem:[%s177 + $0x5e0] sm:$0xff] %v1207
        %2134 = vst [vmem:[%s177 + $0x5e8] sm:$0xff] %v1303
        %2135 = vst [vmem:[%s177 + $0x5f0] sm:$0xff] %v1208
        %2136 = vst [vmem:[%s177 + $0x5f8] sm:$0xff] %v1304
        %2137 = vst [vmem:[%s177 + $0x600] sm:$0xff] %v1225
        %2138 = vst [vmem:[%s177 + $0x608] sm:$0xff] %v1321
        %2139 = vst [vmem:[%s177 + $0x610] sm:$0xff] %v1226
        %2140 = vst [vmem:[%s177 + $0x618] sm:$0xff] %v1322
        %2141 = vst [vmem:[%s177 + $0x620] sm:$0xff] %v1227
        %2142 = vst [vmem:[%s177 + $0x628] sm:$0xff] %v1323
        %2143 = vst [vmem:[%s177 + $0x630] sm:$0xff] %v1228
        %2144 = vst [vmem:[%s177 + $0x638] sm:$0xff] %v1324
        %2145 = vst [vmem:[%s177 + $0x640] sm:$0xff] %v1229
        %2146 = vst [vmem:[%s177 + $0x648] sm:$0xff] %v1325
        %2147 = vst [vmem:[%s177 + $0x650] sm:$0xff] %v1230
        %2148 = vst [vmem:[%s177 + $0x658] sm:$0xff] %v1326
        %2149 = vst [vmem:[%s177 + $0x660] sm:$0xff] %v1231
        %2150 = vst [vmem:[%s177 + $0x668] sm:$0xff] %v1327
        %2151 = vst [vmem:[%s177 + $0x670] sm:$0xff] %v1232
        %2152 = vst [vmem:[%s177 + $0x678] sm:$0xff] %v1328
        %2153 = vst [vmem:[%s177 + $0x680] sm:$0xff] %v1233
        %2154 = vst [vmem:[%s177 + $0x688] sm:$0xff] %v1329
        %2155 = vst [vmem:[%s177 + $0x690] sm:$0xff] %v1234
        %2156 = vst [vmem:[%s177 + $0x698] sm:$0xff] %v1330
        %2157 = vst [vmem:[%s177 + $0x6a0] sm:$0xff] %v1235
        %2158 = vst [vmem:[%s177 + $0x6a8] sm:$0xff] %v1331
        %2159 = vst [vmem:[%s177 + $0x6b0] sm:$0xff] %v1236
        %2160 = vst [vmem:[%s177 + $0x6b8] sm:$0xff] %v1332
        %2161 = vst [vmem:[%s177 + $0x6c0] sm:$0xff] %v1237
        %2162 = vst [vmem:[%s177 + $0x6c8] sm:$0xff] %v1333
        %2163 = vst [vmem:[%s177 + $0x6d0] sm:$0xff] %v1238
        %2164 = vst [vmem:[%s177 + $0x6d8] sm:$0xff] %v1334
        %2165 = vst [vmem:[%s177 + $0x6e0] sm:$0xff] %v1239
        %2166 = vst [vmem:[%s177 + $0x6e8] sm:$0xff] %v1335
        %2167 = vst [vmem:[%s177 + $0x6f0] sm:$0xff] %v1240
        %2168 = vst [vmem:[%s177 + $0x6f8] sm:$0xff] %v1336
        %2169 = vst [vmem:[%s177 + $0x700] sm:$0xff] %v1257
        %2170 = vst [vmem:[%s177 + $0x708] sm:$0xff] %v1353
        %2171 = vst [vmem:[%s177 + $0x710] sm:$0xff] %v1258
        %2172 = vst [vmem:[%s177 + $0x718] sm:$0xff] %v1354
        %2173 = vst [vmem:[%s177 + $0x720] sm:$0xff] %v1259
        %2174 = vst [vmem:[%s177 + $0x728] sm:$0xff] %v1355
        %2175 = vst [vmem:[%s177 + $0x730] sm:$0xff] %v1260
        %2176 = vst [vmem:[%s177 + $0x738] sm:$0xff] %v1356
        %2177 = vst [vmem:[%s177 + $0x740] sm:$0xff] %v1261
        %2178 = vst [vmem:[%s177 + $0x748] sm:$0xff] %v1357
        %2179 = vst [vmem:[%s177 + $0x750] sm:$0xff] %v1262
        %2180 = vst [vmem:[%s177 + $0x758] sm:$0xff] %v1358
        %2181 = vst [vmem:[%s177 + $0x760] sm:$0xff] %v1263
        %2182 = vst [vmem:[%s177 + $0x768] sm:$0xff] %v1359
        %2183 = vst [vmem:[%s177 + $0x770] sm:$0xff] %v1264
        %2184 = vst [vmem:[%s177 + $0x778] sm:$0xff] %v1360
        %2185 = vst [vmem:[%s177 + $0x780] sm:$0xff] %v1385
        %2186 = vst [vmem:[%s177 + $0x788] sm:$0xff] %v1481
        %2187 = vst [vmem:[%s177 + $0x790] sm:$0xff] %v1386
        %2188 = vst [vmem:[%s177 + $0x798] sm:$0xff] %v1482
        %2189 = vst [vmem:[%s177 + $0x7a0] sm:$0xff] %v1387
        %2190 = vst [vmem:[%s177 + $0x7a8] sm:$0xff] %v1483
        %2191 = vst [vmem:[%s177 + $0x7b0] sm:$0xff] %v1388
        %2192 = vst [vmem:[%s177 + $0x7b8] sm:$0xff] %v1484
        %2193 = vst [vmem:[%s177 + $0x7c0] sm:$0xff] %v1389
        %2194 = vst [vmem:[%s177 + $0x7c8] sm:$0xff] %v1485
        %2195 = vst [vmem:[%s177 + $0x7d0] sm:$0xff] %v1390
        %2196 = vst [vmem:[%s177 + $0x7d8] sm:$0xff] %v1486
        %2197 = vst [vmem:[%s177 + $0x7e0] sm:$0xff] %v1391
        %2198 = vst [vmem:[%s177 + $0x7e8] sm:$0xff] %v1487
        %2199 = vst [vmem:[%s177 + $0x7f0] sm:$0xff] %v1392
        %2200 = vst [vmem:[%s177 + $0x7f8] sm:$0xff] %v1488
        %2201 = vst [vmem:[%s177 + $0x800] sm:$0xff] %v1393
        %2202 = vst [vmem:[%s177 + $0x808] sm:$0xff] %v1489
        %2203 = vst [vmem:[%s177 + $0x810] sm:$0xff] %v1394
        %2204 = vst [vmem:[%s177 + $0x818] sm:$0xff] %v1490
        %2205 = vst [vmem:[%s177 + $0x820] sm:$0xff] %v1395
        %2206 = vst [vmem:[%s177 + $0x828] sm:$0xff] %v1491
        %2207 = vst [vmem:[%s177 + $0x830] sm:$0xff] %v1396
        %2208 = vst [vmem:[%s177 + $0x838] sm:$0xff] %v1492
        %2209 = vst [vmem:[%s177 + $0x840] sm:$0xff] %v1397
        %2210 = vst [vmem:[%s177 + $0x848] sm:$0xff] %v1493
        %2211 = vst [vmem:[%s177 + $0x850] sm:$0xff] %v1398
        %2212 = vst [vmem:[%s177 + $0x858] sm:$0xff] %v1494
        %2213 = vst [vmem:[%s177 + $0x860] sm:$0xff] %v1399
        %2214 = vst [vmem:[%s177 + $0x868] sm:$0xff] %v1495
        %2215 = vst [vmem:[%s177 + $0x870] sm:$0xff] %v1400
        %2216 = vst [vmem:[%s177 + $0x878] sm:$0xff] %v1496
        %2217 = vst [vmem:[%s177 + $0x880] sm:$0xff] %v1417
        %2218 = vst [vmem:[%s177 + $0x888] sm:$0xff] %v1513
        %2219 = vst [vmem:[%s177 + $0x890] sm:$0xff] %v1418
        %2220 = vst [vmem:[%s177 + $0x898] sm:$0xff] %v1514
        %2221 = vst [vmem:[%s177 + $0x8a0] sm:$0xff] %v1419
        %2222 = vst [vmem:[%s177 + $0x8a8] sm:$0xff] %v1515
        %2223 = vst [vmem:[%s177 + $0x8b0] sm:$0xff] %v1420
        %2224 = vst [vmem:[%s177 + $0x8b8] sm:$0xff] %v1516
        %2225 = vst [vmem:[%s177 + $0x8c0] sm:$0xff] %v1421
        %2226 = vst [vmem:[%s177 + $0x8c8] sm:$0xff] %v1517
        %2227 = vst [vmem:[%s177 + $0x8d0] sm:$0xff] %v1422
        %2228 = vst [vmem:[%s177 + $0x8d8] sm:$0xff] %v1518
        %2229 = vst [vmem:[%s177 + $0x8e0] sm:$0xff] %v1423
        %2230 = vst [vmem:[%s177 + $0x8e8] sm:$0xff] %v1519
        %2231 = vst [vmem:[%s177 + $0x8f0] sm:$0xff] %v1424
        %2232 = vst [vmem:[%s177 + $0x8f8] sm:$0xff] %v1520
        %2233 = vst [vmem:[%s177 + $0x900] sm:$0xff] %v1425
        %2234 = vst [vmem:[%s177 + $0x908] sm:$0xff] %v1521
        %2235 = vst [vmem:[%s177 + $0x910] sm:$0xff] %v1426
        %2236 = vst [vmem:[%s177 + $0x918] sm:$0xff] %v1522
        %2237 = vst [vmem:[%s177 + $0x920] sm:$0xff] %v1427
        %2238 = vst [vmem:[%s177 + $0x928] sm:$0xff] %v1523
        %2239 = vst [vmem:[%s177 + $0x930] sm:$0xff] %v1428
        %2240 = vst [vmem:[%s177 + $0x938] sm:$0xff] %v1524
        %2241 = vst [vmem:[%s177 + $0x940] sm:$0xff] %v1429
        %2242 = vst [vmem:[%s177 + $0x948] sm:$0xff] %v1525
        %2243 = vst [vmem:[%s177 + $0x950] sm:$0xff] %v1430
        %2244 = vst [vmem:[%s177 + $0x958] sm:$0xff] %v1526
        %2245 = vst [vmem:[%s177 + $0x960] sm:$0xff] %v1431
        %2246 = vst [vmem:[%s177 + $0x968] sm:$0xff] %v1527
        %2247 = vst [vmem:[%s177 + $0x970] sm:$0xff] %v1432
        %2248 = vst [vmem:[%s177 + $0x978] sm:$0xff] %v1528
        %2249 = vst [vmem:[%s177 + $0x980] sm:$0xff] %v1449
        %2250 = vst [vmem:[%s177 + $0x988] sm:$0xff] %v1545
        %2251 = vst [vmem:[%s177 + $0x990] sm:$0xff] %v1450
        %2252 = vst [vmem:[%s177 + $0x998] sm:$0xff] %v1546
        %2253 = vst [vmem:[%s177 + $0x9a0] sm:$0xff] %v1451
        %2254 = vst [vmem:[%s177 + $0x9a8] sm:$0xff] %v1547
        %2255 = vst [vmem:[%s177 + $0x9b0] sm:$0xff] %v1452
        %2256 = vst [vmem:[%s177 + $0x9b8] sm:$0xff] %v1548
        %2257 = vst [vmem:[%s177 + $0x9c0] sm:$0xff] %v1453
        %2258 = vst [vmem:[%s177 + $0x9c8] sm:$0xff] %v1549
        %2259 = vst [vmem:[%s177 + $0x9d0] sm:$0xff] %v1454
        %2260 = vst [vmem:[%s177 + $0x9d8] sm:$0xff] %v1550
        %2261 = vst [vmem:[%s177 + $0x9e0] sm:$0xff] %v1455
        %2262 = vst [vmem:[%s177 + $0x9e8] sm:$0xff] %v1551
        %2263 = vst [vmem:[%s177 + $0x9f0] sm:$0xff] %v1456
        %2264 = vst [vmem:[%s177 + $0x9f8] sm:$0xff] %v1552
        %2265 = vst [vmem:[%s177 + $0xa00] sm:$0xff] %v1577
        %2266 = vst [vmem:[%s177 + $0xa08] sm:$0xff] %v1673
        %2267 = vst [vmem:[%s177 + $0xa10] sm:$0xff] %v1578
        %2268 = vst [vmem:[%s177 + $0xa18] sm:$0xff] %v1674
        %2269 = vst [vmem:[%s177 + $0xa20] sm:$0xff] %v1579
        %2270 = vst [vmem:[%s177 + $0xa28] sm:$0xff] %v1675
        %2271 = vst [vmem:[%s177 + $0xa30] sm:$0xff] %v1580
        %2272 = vst [vmem:[%s177 + $0xa38] sm:$0xff] %v1676
        %2273 = vst [vmem:[%s177 + $0xa40] sm:$0xff] %v1581
        %2274 = vst [vmem:[%s177 + $0xa48] sm:$0xff] %v1677
        %2275 = vst [vmem:[%s177 + $0xa50] sm:$0xff] %v1582
        %2276 = vst [vmem:[%s177 + $0xa58] sm:$0xff] %v1678
        %2277 = vst [vmem:[%s177 + $0xa60] sm:$0xff] %v1583
        %2278 = vst [vmem:[%s177 + $0xa68] sm:$0xff] %v1679
        %2279 = vst [vmem:[%s177 + $0xa70] sm:$0xff] %v1584
        %2280 = vst [vmem:[%s177 + $0xa78] sm:$0xff] %v1680
        %2281 = vst [vmem:[%s177 + $0xa80] sm:$0xff] %v1585
        %2282 = vst [vmem:[%s177 + $0xa88] sm:$0xff] %v1681
        %2283 = vst [vmem:[%s177 + $0xa90] sm:$0xff] %v1586
        %2284 = vst [vmem:[%s177 + $0xa98] sm:$0xff] %v1682
        %2285 = vst [vmem:[%s177 + $0xaa0] sm:$0xff] %v1587
        %2286 = vst [vmem:[%s177 + $0xaa8] sm:$0xff] %v1683
        %2287 = vst [vmem:[%s177 + $0xab0] sm:$0xff] %v1588
        %2288 = vst [vmem:[%s177 + $0xab8] sm:$0xff] %v1684
        %2289 = vst [vmem:[%s177 + $0xac0] sm:$0xff] %v1589
        %2290 = vst [vmem:[%s177 + $0xac8] sm:$0xff] %v1685
        %2291 = vst [vmem:[%s177 + $0xad0] sm:$0xff] %v1590
        %2292 = vst [vmem:[%s177 + $0xad8] sm:$0xff] %v1686
        %2293 = vst [vmem:[%s177 + $0xae0] sm:$0xff] %v1591
        %2294 = vst [vmem:[%s177 + $0xae8] sm:$0xff] %v1687
        %2295 = vst [vmem:[%s177 + $0xaf0] sm:$0xff] %v1592
        %2296 = vst [vmem:[%s177 + $0xaf8] sm:$0xff] %v1688
        %2297 = vst [vmem:[%s177 + $0xb00] sm:$0xff] %v1609
        %2298 = vst [vmem:[%s177 + $0xb08] sm:$0xff] %v1705
        %2299 = vst [vmem:[%s177 + $0xb10] sm:$0xff] %v1610
        %2300 = vst [vmem:[%s177 + $0xb18] sm:$0xff] %v1706
        %2301 = vst [vmem:[%s177 + $0xb20] sm:$0xff] %v1611
        %2302 = vst [vmem:[%s177 + $0xb28] sm:$0xff] %v1707
        %2303 = vst [vmem:[%s177 + $0xb30] sm:$0xff] %v1612
        %2304 = vst [vmem:[%s177 + $0xb38] sm:$0xff] %v1708
        %2305 = vst [vmem:[%s177 + $0xb40] sm:$0xff] %v1613
        %2306 = vst [vmem:[%s177 + $0xb48] sm:$0xff] %v1709
        %2307 = vst [vmem:[%s177 + $0xb50] sm:$0xff] %v1614
        %2308 = vst [vmem:[%s177 + $0xb58] sm:$0xff] %v1710
        %2309 = vst [vmem:[%s177 + $0xb60] sm:$0xff] %v1615
        %2310 = vst [vmem:[%s177 + $0xb68] sm:$0xff] %v1711
        %2311 = vst [vmem:[%s177 + $0xb70] sm:$0xff] %v1616
        %2312 = vst [vmem:[%s177 + $0xb78] sm:$0xff] %v1712
        %2313 = vst [vmem:[%s177 + $0xb80] sm:$0xff] %v1617
        %2314 = vst [vmem:[%s177 + $0xb88] sm:$0xff] %v1713
        %2315 = vst [vmem:[%s177 + $0xb90] sm:$0xff] %v1618
        %2316 = vst [vmem:[%s177 + $0xb98] sm:$0xff] %v1714
        %2317 = vst [vmem:[%s177 + $0xba0] sm:$0xff] %v1619
        %2318 = vst [vmem:[%s177 + $0xba8] sm:$0xff] %v1715
        %2319 = vst [vmem:[%s177 + $0xbb0] sm:$0xff] %v1620
        %2320 = vst [vmem:[%s177 + $0xbb8] sm:$0xff] %v1716
        %2321 = vst [vmem:[%s177 + $0xbc0] sm:$0xff] %v1621
        %2322 = vst [vmem:[%s177 + $0xbc8] sm:$0xff] %v1717
        %2323 = vst [vmem:[%s177 + $0xbd0] sm:$0xff] %v1622
        %2324 = vst [vmem:[%s177 + $0xbd8] sm:$0xff] %v1718
        %2325 = vst [vmem:[%s177 + $0xbe0] sm:$0xff] %v1623
        %2326 = vst [vmem:[%s177 + $0xbe8] sm:$0xff] %v1719
        %2327 = vst [vmem:[%s177 + $0xbf0] sm:$0xff] %v1624
        %2328 = vst [vmem:[%s177 + $0xbf8] sm:$0xff] %v1720
        %2329 = vst [vmem:[%s177 + $0xc00] sm:$0xff] %v1641
        %2330 = vst [vmem:[%s177 + $0xc08] sm:$0xff] %v1737
        %2331 = vst [vmem:[%s177 + $0xc10] sm:$0xff] %v1642
        %2332 = vst [vmem:[%s177 + $0xc18] sm:$0xff] %v1738
        %2333 = vst [vmem:[%s177 + $0xc20] sm:$0xff] %v1643
        %2334 = vst [vmem:[%s177 + $0xc28] sm:$0xff] %v1739
        %2335 = vst [vmem:[%s177 + $0xc30] sm:$0xff] %v1644
        %2336 = vst [vmem:[%s177 + $0xc38] sm:$0xff] %v1740
        %2337 = vst [vmem:[%s177 + $0xc40] sm:$0xff] %v1645
        %2338 = vst [vmem:[%s177 + $0xc48] sm:$0xff] %v1741
        %2339 = vst [vmem:[%s177 + $0xc50] sm:$0xff] %v1646
        %2340 = vst [vmem:[%s177 + $0xc58] sm:$0xff] %v1742
        %2341 = vst [vmem:[%s177 + $0xc60] sm:$0xff] %v1647
        %2342 = vst [vmem:[%s177 + $0xc68] sm:$0xff] %v1743
        %2343 = vst [vmem:[%s177 + $0xc70] sm:$0xff] %v1648
        %2344 = vst [vmem:[%s177 + $0xc78] sm:$0xff] %v1744
        %2345 = vst [vmem:[%s177 + $0xc80] sm:$0xff] %v1769
        %2346 = vst [vmem:[%s177 + $0xc88] sm:$0xff] %v1865
        %2347 = vst [vmem:[%s177 + $0xc90] sm:$0xff] %v1770
        %2348 = vst [vmem:[%s177 + $0xc98] sm:$0xff] %v1866
        %2349 = vst [vmem:[%s177 + $0xca0] sm:$0xff] %v1771
        %2350 = vst [vmem:[%s177 + $0xca8] sm:$0xff] %v1867
        %2351 = vst [vmem:[%s177 + $0xcb0] sm:$0xff] %v1772
        %2352 = vst [vmem:[%s177 + $0xcb8] sm:$0xff] %v1868
        %2353 = vst [vmem:[%s177 + $0xcc0] sm:$0xff] %v1773
        %2354 = vst [vmem:[%s177 + $0xcc8] sm:$0xff] %v1869
        %2355 = vst [vmem:[%s177 + $0xcd0] sm:$0xff] %v1774
        %2356 = vst [vmem:[%s177 + $0xcd8] sm:$0xff] %v1870
        %2357 = vst [vmem:[%s177 + $0xce0] sm:$0xff] %v1775
        %2358 = vst [vmem:[%s177 + $0xce8] sm:$0xff] %v1871
        %2359 = vst [vmem:[%s177 + $0xcf0] sm:$0xff] %v1776
        %2360 = vst [vmem:[%s177 + $0xcf8] sm:$0xff] %v1872
        %2361 = vst [vmem:[%s177 + $0xd00] sm:$0xff] %v1777
        %2362 = vst [vmem:[%s177 + $0xd08] sm:$0xff] %v1873
        %2363 = vst [vmem:[%s177 + $0xd10] sm:$0xff] %v1778
        %2364 = vst [vmem:[%s177 + $0xd18] sm:$0xff] %v1874
        %2365 = vst [vmem:[%s177 + $0xd20] sm:$0xff] %v1779
        %2366 = vst [vmem:[%s177 + $0xd28] sm:$0xff] %v1875
        %2367 = vst [vmem:[%s177 + $0xd30] sm:$0xff] %v1780
        %2368 = vst [vmem:[%s177 + $0xd38] sm:$0xff] %v1876
        %2369 = vst [vmem:[%s177 + $0xd40] sm:$0xff] %v1781
        %2370 = vst [vmem:[%s177 + $0xd48] sm:$0xff] %v1877
        %2371 = vst [vmem:[%s177 + $0xd50] sm:$0xff] %v1782
        %2372 = vst [vmem:[%s177 + $0xd58] sm:$0xff] %v1878
        %2373 = vst [vmem:[%s177 + $0xd60] sm:$0xff] %v1783
        %2374 = vst [vmem:[%s177 + $0xd68] sm:$0xff] %v1879
        %2375 = vst [vmem:[%s177 + $0xd70] sm:$0xff] %v1784
        %2376 = vst [vmem:[%s177 + $0xd78] sm:$0xff] %v1880
        %2377 = vst [vmem:[%s177 + $0xd80] sm:$0xff] %v1801
        %2378 = vst [vmem:[%s177 + $0xd88] sm:$0xff] %v1897
        %2379 = vst [vmem:[%s177 + $0xd90] sm:$0xff] %v1802
        %2380 = vst [vmem:[%s177 + $0xd98] sm:$0xff] %v1898
        %2381 = vst [vmem:[%s177 + $0xda0] sm:$0xff] %v1803
        %2382 = vst [vmem:[%s177 + $0xda8] sm:$0xff] %v1899
        %2383 = vst [vmem:[%s177 + $0xdb0] sm:$0xff] %v1804
        %2384 = vst [vmem:[%s177 + $0xdb8] sm:$0xff] %v1900
        %2385 = vst [vmem:[%s177 + $0xdc0] sm:$0xff] %v1805
        %2386 = vst [vmem:[%s177 + $0xdc8] sm:$0xff] %v1901
        %2387 = vst [vmem:[%s177 + $0xdd0] sm:$0xff] %v1806
        %2388 = vst [vmem:[%s177 + $0xdd8] sm:$0xff] %v1902
        %2389 = vst [vmem:[%s177 + $0xde0] sm:$0xff] %v1807
        %2390 = vst [vmem:[%s177 + $0xde8] sm:$0xff] %v1903
        %2391 = vst [vmem:[%s177 + $0xdf0] sm:$0xff] %v1808
        %2392 = vst [vmem:[%s177 + $0xdf8] sm:$0xff] %v1904
        %2393 = vst [vmem:[%s177 + $0xe00] sm:$0xff] %v1809
        %2394 = vst [vmem:[%s177 + $0xe08] sm:$0xff] %v1905
        %2395 = vst [vmem:[%s177 + $0xe10] sm:$0xff] %v1810
        %2396 = vst [vmem:[%s177 + $0xe18] sm:$0xff] %v1906
        %2397 = vst [vmem:[%s177 + $0xe20] sm:$0xff] %v1811
        %2398 = vst [vmem:[%s177 + $0xe28] sm:$0xff] %v1907
        %2399 = vst [vmem:[%s177 + $0xe30] sm:$0xff] %v1812
        %2400 = vst [vmem:[%s177 + $0xe38] sm:$0xff] %v1908
        %2401 = vst [vmem:[%s177 + $0xe40] sm:$0xff] %v1813
        %2402 = vst [vmem:[%s177 + $0xe48] sm:$0xff] %v1909
        %2403 = vst [vmem:[%s177 + $0xe50] sm:$0xff] %v1814
        %2404 = vst [vmem:[%s177 + $0xe58] sm:$0xff] %v1910
        %2405 = vst [vmem:[%s177 + $0xe60] sm:$0xff] %v1815
        %2406 = vst [vmem:[%s177 + $0xe68] sm:$0xff] %v1911
        %2407 = vst [vmem:[%s177 + $0xe70] sm:$0xff] %v1816
        %2408 = vst [vmem:[%s177 + $0xe78] sm:$0xff] %v1912
        %2409 = vst [vmem:[%s177 + $0xe80] sm:$0xff] %v1833
        %2410 = vst [vmem:[%s177 + $0xe88] sm:$0xff] %v1929
        %2411 = vst [vmem:[%s177 + $0xe90] sm:$0xff] %v1834
        %2412 = vst [vmem:[%s177 + $0xe98] sm:$0xff] %v1930
        %2413 = vst [vmem:[%s177 + $0xea0] sm:$0xff] %v1835
        %2414 = vst [vmem:[%s177 + $0xea8] sm:$0xff] %v1931
        %2415 = vst [vmem:[%s177 + $0xeb0] sm:$0xff] %v1836
        %2416 = vst [vmem:[%s177 + $0xeb8] sm:$0xff] %v1932
        %2417 = vst [vmem:[%s177 + $0xec0] sm:$0xff] %v1837
        %2418 = vst [vmem:[%s177 + $0xec8] sm:$0xff] %v1933
        %2419 = vst [vmem:[%s177 + $0xed0] sm:$0xff] %v1838
        %2420 = vst [vmem:[%s177 + $0xed8] sm:$0xff] %v1934
        %2421 = vst [vmem:[%s177 + $0xee0] sm:$0xff] %v1839
        %2422 = vst [vmem:[%s177 + $0xee8] sm:$0xff] %v1935
        %2423 = vst [vmem:[%s177 + $0xef0] sm:$0xff] %v1840
        %2424 = vst [vmem:[%s177 + $0xef8] sm:$0xff] %v1936
        %s2425 = sand.u32 %s76, 1
        %s2426 = scalar_lea.sflag [#allocation3], %s2425
        %s2427 = sand.u32 %s76, 1
        %s2428 = smul.addr %s2427, 3840
        %s2429 = scalar_lea.vmem [#allocation2], %s2428
        // Predicated region
        $region25: #{tpu_custom_call.1} parent=23 // pred_check
          %p2430 = pneg %p86
        $region26: #{tpu_custom_call.1} parent=23 // pred_check_branch
          %2432 = sbr.rel (%p2430) target = $region28
        $region27: #{tpu_custom_call.1} parent=23 // pred_region
          %s2433 = smul.u32 6, %s20
          %s2434 = smul.u32 40, %s22
          %s2435 = smul.u32 2, %s21
          %s2436 = ssub.s32 8, %s2433
          %p2437 = scmp.lt.s32.totalorder %s2436, 6
          %s2438 = scalar_select %p2437, %s2436, 6
          %s2439 = smul.u32 8, %s2438
          %s2440 = smul.u32 %s2439, 40
          %s2441 = smul.u32 %s2440, 2
          %s2442 = ssub.s32 3840, %s2441
          %s2443 = sshll.u32 %s2442, 4
          %2444 = vsyncadd %s2426, %s2443
          %p2445 = scmp.ne.s32.totalorder 0, %s2441
          %s2446 = smul.addr %s2434, 2
          %s2447 = sadd.s32 %s2435, %s2446
          %s2448 = smul.addr %s2433, 80
          %s2449 = sadd.s32 %s2447, %s2448
          %s2450 = smul.addr %s2449, 8
          %s2451 = scalar_lea.hbm %s1, %s2450
          %s2452 = smul.u32 %s2438, 40
          %s2453 = smul.u32 16, %s2452
          %s2454 = sshll.u32 %s2429, 4
          %s2455 = int_to_ptr.vmem [resolvable:$true] %s2454
          %s2456 = sshll.u32 %s2451, 4
          %s2457 = int_to_ptr.hbm [resolvable:$true] %s2456
          %s2458 = sshll.u32 %s2453, 4
          %2462 = dma.vmem_to_hbm [thread:$0]  (%p2445), %s2455, %s2458, %s2457, %s2426, 256, 256, 16
        $region28: #{tpu_custom_call.1} parent=23 // pred_fallthru
          _
      $region24: #{tpu_custom_call.1} parent=5 // pred_fallthru
        _
      %p2463 = scmp.le.s32.totalorder 2, %s10
      // Predicated region
      $region29: #{tpu_custom_call.1} parent=5 // pred_check
        %p2464 = pneg %p2463
      $region30: #{tpu_custom_call.1} parent=5 // pred_check_branch
        %2466 = sbr.rel (%p2464) target = $region32
      $region31: #{tpu_custom_call.1} parent=5 // pred_region
        %s2467 = ssub.s32 %s10, 2
        // Predicated region
        $region33: #{tpu_custom_call.1} parent=31 // pred_check
          %p2468 = pneg %p92
        $region34: #{tpu_custom_call.1} parent=31 // pred_check_branch
          %2470 = sbr.rel (%p2468) target = $region36
        $region35: #{tpu_custom_call.1} parent=31 // pred_region
          %s2471 = sand.u32 %s77, 1
          %s2472 = scalar_lea.sflag [#allocation3], %s2471
          %s2473 = sand.u32 %s77, 1
          %s2474 = smul.addr %s2473, 3840
          %s2475 = scalar_lea.vmem [#allocation2], %s2474
          %2477 = dma.done %s2472, 61440
        $region36: #{tpu_custom_call.1} parent=31 // pred_fallthru
          _
      $region32: #{tpu_custom_call.1} parent=5 // pred_fallthru
        _
    $region6: #{tpu_custom_call.1} parent=1 // loop_footer
      %s14 = sadd.s32 1, %s10
    $region7: #{tpu_custom_call.1} parent=1 // loop_footer_branch
      %9 = sbr.rel target = $region3
    $region8: #{tpu_custom_call.1} parent=1 // loop_exit
      _
    %2478 = vsyncpa [#allocation3], 1
    %s2479 = scalar_lea.sflag [#allocation3], 1
    %2480 = vsyncpa %s2479, 1

</llo_original>
